<compile_context>
chip_gen: v5e
topology: v5e:2x2
jax: 0.10.0
libtpu: 0.0.40
codegen_flags: <defaults>
</compile_context>

<pallas_src>
import functools

import jax
import jax.numpy as jnp
from jax.experimental import pallas as pl
from jax.experimental.pallas import tpu as pltpu


def _round_up(n, m):
    return ((n + m - 1) // m) * m


def _sigmoid_via_tanh(x):
    # One EUP op instead of exp + add + reciprocal; mathematically == sigmoid.
    return 0.5 * (jnp.tanh(0.5 * x) + 1.0)


def _lstm_fc_kernel(x_ref, w_ih_ref, w_hh_ref, b_ref, w_fc_ref, b_fc_ref,
                    out_ref, *, T, Hp, D_in):
    """Full forward pass: per-step input broadcast + recurrence + final Linear.

    x_ref    : (T, Bp, D_in) f32   time-major, batch sublane-padded to Bp
    w_ih_ref : (D_in, 4*Hp)  f32   gate order (i, f, o, g), lane-padded
    w_hh_ref : (Hp, 4*Hp)    f32   gate order (i, f, o, g), zero-padded rows/cols
    b_ref    : (1, 4*Hp)     f32   b_ih + b_hh, gate order (i, f, o, g)
    w_fc_ref : (Hp, Op)      f32   zero-padded rows/cols
    b_fc_ref : (1, Op)       f32   zero-padded
    out_ref  : (Bp, Op)      f32
    """
    Bp = out_ref.shape[0]

    w_row = w_ih_ref[...]        # (D_in, 4*Hp)
    b_row = b_ref[...]           # (1, 4*Hp)
    w_hh = w_hh_ref[...]         # (Hp, 4*Hp)

    h = jnp.zeros((Bp, Hp), jnp.float32)
    c = jnp.zeros((Bp, Hp), jnp.float32)

    # T is small and static: fully unroll.  Each step is one MXU push
    # (h @ w_hh) plus lane-aligned VPU/EUP gate math; the input contribution is
    # a cheap VPU broadcast (D_in == 1 for this model) and is off the serial
    # h->h critical path, so the scheduler can precompute it.
    for t in range(T):
        xt = x_ref[t]                                    # (Bp, D_in)
        xproj = b_row                                    # (1, 4*Hp) -> broadcast
        for d in range(D_in):                            # D_in is tiny (1): VPU only
            xproj = xproj + xt[:, d:d + 1] * w_row[d:d + 1, :]
        gates = xproj + jnp.dot(h, w_hh, preferred_element_type=jnp.float32)

        # Gate layout (i, f, o, g): one sigmoid slab, one tanh slab.
        ifo = _sigmoid_via_tanh(gates[:, :3 * Hp])       # (Bp, 3*Hp)
        g_g = jnp.tanh(gates[:, 3 * Hp:])                # (Bp, Hp)
        i_g = ifo[:, 0 * Hp:1 * Hp]
        f_g = ifo[:, 1 * Hp:2 * Hp]
        o_g = ifo[:, 2 * Hp:3 * Hp]

        c = f_g * c + i_g * g_g
        h = o_g * jnp.tanh(c)

    # Final fully-connected layer on the last hidden state (== out[:, -1, :]).
    out_ref[...] = (
        jnp.dot(h, w_fc_ref[...], preferred_element_type=jnp.float32)
        + b_fc_ref[...]
    )


# PyTorch nn.LSTM gate order along the 4H axis is (i, f, g, o).
# We re-lay it out as (i, f, o, g) so the three sigmoids are contiguous.
_GATE_PERM = (0, 1, 3, 2)


def prepare_params(w_ih, w_hh, b_ih, b_hh, w_fc, b_fc):
    """One-time weight prep (padding / transposition / gate reorder).

    Weights are given in PyTorch layout:
      w_ih: (4H, D_in), w_hh: (4H, H), b_ih/b_hh: (4H,), w_fc: (O, H), b_fc: (O,)
    Returns a tuple of padded f32 arrays for the kernel plus the true output size.
    """
    f32 = jnp.float32
    H = w_hh.shape[1]
    D_in = w_ih.shape[1]
    O = w_fc.shape[0]

    Hp = max(128, _round_up(H, 128))      # lane-align gate slices at k*Hp
    Op = max(128, _round_up(O, 128))      # lane-dense final store

    def pad_gates(m):                     # m: (rows, 4H) -> (rows, 4*Hp), reordered
        rows = m.shape[0]
        out = jnp.zeros((rows, 4 * Hp), f32)
        for new_k, old_k in enumerate(_GATE_PERM):
            out = out.at[:, new_k * Hp:new_k * Hp + H].set(
                m[:, old_k * H:(old_k + 1) * H])
        return out

    w_ih_p = pad_gates(w_ih.T.astype(f32))                       # (D_in, 4*Hp)
    w_hh_p = jnp.zeros((Hp, 4 * Hp), f32).at[:H, :].set(
        pad_gates(w_hh.T.astype(f32)))                           # (Hp, 4*Hp)
    b_p = pad_gates((b_ih + b_hh).astype(f32).reshape(1, 4 * H))  # (1, 4*Hp)

    w_fc_p = jnp.zeros((Hp, Op), f32).at[:H, :O].set(w_fc.T.astype(f32))
    b_fc_p = jnp.zeros((1, Op), f32).at[:, :O].set(b_fc.astype(f32).reshape(1, O))

    padded = (w_ih_p, w_hh_p, b_p, w_fc_p, b_fc_p)
    padded = jax.tree_util.tree_map(jax.block_until_ready, padded)
    return padded, O


@functools.partial(jax.jit, static_argnums=(2,))
def lstm_model_forward(x, padded_params, out_size):
    """x: (B, T, D_in) f32, padded_params from prepare_params. Returns (B, O)."""
    w_ih_p, w_hh_p, b_p, w_fc_p, b_fc_p = padded_params
    B, T, D_in = x.shape
    Hp = w_hh_p.shape[0]
    Op = w_fc_p.shape[1]
    Bp = max(8, _round_up(B, 8))          # sublane-align the batch rows

    f32 = jnp.float32
    # Per-call x prep only: time-major + sublane pad.  Padded batch rows carry
    # garbage hidden state but never touch real rows (row-independent math).
    x_t = jnp.transpose(x, (1, 0, 2)).astype(f32)                # (T, B, D_in)
    x_p = jnp.zeros((T, Bp, D_in), f32).at[:, :B, :].set(x_t)    # (T, Bp, D_in)

    vmem = pl.BlockSpec(memory_space=pltpu.MemorySpace.VMEM)
    out_padded = pl.pallas_call(
        functools.partial(_lstm_fc_kernel, T=T, Hp=Hp, D_in=D_in),
        out_shape=jax.ShapeDtypeStruct((Bp, Op), f32),
        in_specs=[vmem] * 6,
        out_specs=vmem,
    )(x_p, w_ih_p, w_hh_p, b_p, w_fc_p, b_fc_p)

    return out_padded[:B, :out_size]


def _reference_forward(x, w_ih, w_hh, b_ih, b_hh, w_fc, b_fc):
    """Pure-JAX reference mirroring torch.nn.LSTM + Linear semantics."""
    B, T, _ = x.shape
    H = w_hh.shape[1]
    h = jnp.zeros((B, H), jnp.float32)
    c = jnp.zeros((B, H), jnp.float32)
    for t in range(T):
        gates = x[:, t, :] @ w_ih.T + h @ w_hh.T + b_ih + b_hh
        i = jax.nn.sigmoid(gates[:, 0 * H:1 * H])
        f = jax.nn.sigmoid(gates[:, 1 * H:2 * H])
        g = jnp.tanh(gates[:, 2 * H:3 * H])
        o = jax.nn.sigmoid(gates[:, 3 * H:4 * H])
        c = f * c + i * g
        h = o * jnp.tanh(c)
    return h @ w_fc.T + b_fc


if __name__ == "__main__":
    # Module defaults: input_size=1, hidden_size=50, num_layers=1, output_size=60.
    B, T, D_IN, H, O = 2, 8, 1, 50, 60

    key = jax.random.PRNGKey(0)
    ks = jax.random.split(key, 7)
    scale = 1.0 / jnp.sqrt(H)   # matches PyTorch's uniform(-1/sqrt(H), 1/sqrt(H))
    w_ih = jax.random.uniform(ks[0], (4 * H, D_IN), jnp.float32, -scale, scale)
    w_hh = jax.random.uniform(ks[1], (4 * H, H), jnp.float32, -scale, scale)
    b_ih = jax.random.uniform(ks[2], (4 * H,), jnp.float32, -scale, scale)
    b_hh = jax.random.uniform(ks[3], (4 * H,), jnp.float32, -scale, scale)
    w_fc = jax.random.uniform(ks[4], (O, H), jnp.float32, -scale, scale)
    b_fc = jax.random.uniform(ks[5], (O,), jnp.float32, -scale, scale)

    x = jax.random.normal(ks[6], (B, T, D_IN), jnp.float32)

    # One-time weight prep (hoisted out of the per-call hot path).
    padded_params, out_size = prepare_params(w_ih, w_hh, b_ih, b_hh, w_fc, b_fc)

    out = lstm_model_forward(x, padded_params, out_size)
    out = jax.block_until_ready(out)
    assert out.shape == (B, O), out.shape

    ref = _reference_forward(x, w_ih, w_hh, b_ih, b_hh, w_fc, b_fc)
    assert jnp.allclose(out, ref, atol=1e-4, rtol=1e-4), float(jnp.abs(out - ref).max())

    print("KERNEL_OK")
</pallas_src>

<mosaic_0001>
module attributes {stable_mosaic.version = 11 : i64} {
  func.func @_lstm_fc_kernel(%arg0: memref<8x8x1xf32, #tpu.memory_space<vmem>>, %arg1: memref<1x512xf32, #tpu.memory_space<vmem>>, %arg2: memref<128x512xf32, #tpu.memory_space<vmem>>, %arg3: memref<1x512xf32, #tpu.memory_space<vmem>>, %arg4: memref<128x128xf32, #tpu.memory_space<vmem>>, %arg5: memref<1x128xf32, #tpu.memory_space<vmem>>, %arg6: memref<8x128xf32, #tpu.memory_space<vmem>>) attributes {dimension_semantics = [], scalar_prefetch = 0 : i64, scratch_operands = 0 : i64, tpu.core_type = #tpu.core_type<tc>} {
    %c0 = arith.constant 0 : index
    %c0_0 = arith.constant 0 : index
    %0 = vector.load %arg1[%c0, %c0_0] : memref<1x512xf32, #tpu.memory_space<vmem>>, vector<1x512xf32>
    %c0_1 = arith.constant 0 : index
    %c0_2 = arith.constant 0 : index
    %1 = vector.load %arg3[%c0_1, %c0_2] : memref<1x512xf32, #tpu.memory_space<vmem>>, vector<1x512xf32>
    %c0_3 = arith.constant 0 : index
    %c0_4 = arith.constant 0 : index
    %2 = vector.load %arg2[%c0_3, %c0_4] : memref<128x512xf32, #tpu.memory_space<vmem>>, vector<128x512xf32>
    %cst = arith.constant 0.000000e+00 : f32
    %3 = vector.broadcast %cst : f32 to vector<8x128xf32>
    %cst_5 = arith.constant 0.000000e+00 : f32
    %4 = vector.broadcast %cst_5 : f32 to vector<8x128xf32>
    %c0_6 = arith.constant 0 : index
    %c0_7 = arith.constant 0 : index
    %c0_8 = arith.constant 0 : index
    %5 = vector.load %arg0[%c0_6, %c0_7, %c0_8] : memref<8x8x1xf32, #tpu.memory_space<vmem>>, vector<1x8x1xf32>
    %6 = vector.shape_cast %5 : vector<1x8x1xf32> to vector<8x1xf32>
    %7 = vector.broadcast %6 : vector<8x1xf32> to vector<8x512xf32>
    %8 = vector.broadcast %0 : vector<1x512xf32> to vector<8x512xf32>
    %9 = arith.mulf %7, %8 : vector<8x512xf32>
    %10 = vector.broadcast %1 : vector<1x512xf32> to vector<8x512xf32>
    %11 = arith.addf %10, %9 : vector<8x512xf32>
    %cst_9 = arith.constant dense<0.000000e+00> : vector<8x512xf32>
    %12 = tpu.matmul %3, %2, %cst_9 {dimension_numbers = #tpu.dot_dimension_numbers<[1], [0], [0], [1], [0, 0, 1, 1], [], []>} : vector<8x128xf32>, vector<128x512xf32>, vector<8x512xf32> -> vector<8x512xf32>
    %13 = arith.addf %11, %12 : vector<8x512xf32>
    %14 = vector.extract_strided_slice %13 {offsets = [0, 0], sizes = [8, 384], strides = [1, 1]} : vector<8x512xf32> to vector<8x384xf32>
    %cst_10 = arith.constant 5.000000e-01 : f32
    %15 = vector.broadcast %cst_10 : f32 to vector<8x384xf32>
    %16 = arith.mulf %15, %14 : vector<8x384xf32>
    %17 = math.tanh %16 : vector<8x384xf32>
    %cst_11 = arith.constant 1.000000e+00 : f32
    %18 = vector.broadcast %cst_11 : f32 to vector<8x384xf32>
    %19 = arith.addf %17, %18 : vector<8x384xf32>
    %cst_12 = arith.constant 5.000000e-01 : f32
    %20 = vector.broadcast %cst_12 : f32 to vector<8x384xf32>
    %21 = arith.mulf %20, %19 : vector<8x384xf32>
    %22 = vector.extract_strided_slice %13 {offsets = [0, 384], sizes = [8, 128], strides = [1, 1]} : vector<8x512xf32> to vector<8x128xf32>
    %23 = math.tanh %22 : vector<8x128xf32>
    %24 = vector.extract_strided_slice %21 {offsets = [0, 0], sizes = [8, 128], strides = [1, 1]} : vector<8x384xf32> to vector<8x128xf32>
    %25 = vector.extract_strided_slice %21 {offsets = [0, 128], sizes = [8, 128], strides = [1, 1]} : vector<8x384xf32> to vector<8x128xf32>
    %26 = vector.extract_strided_slice %21 {offsets = [0, 256], sizes = [8, 128], strides = [1, 1]} : vector<8x384xf32> to vector<8x128xf32>
    %27 = arith.mulf %25, %4 : vector<8x128xf32>
    %28 = arith.mulf %24, %23 : vector<8x128xf32>
    %29 = arith.addf %27, %28 : vector<8x128xf32>
    %30 = math.tanh %29 : vector<8x128xf32>
    %31 = arith.mulf %26, %30 : vector<8x128xf32>
    %c1 = arith.constant 1 : index
    %c0_13 = arith.constant 0 : index
    %c0_14 = arith.constant 0 : index
    %32 = vector.load %arg0[%c1, %c0_13, %c0_14] : memref<8x8x1xf32, #tpu.memory_space<vmem>>, vector<1x8x1xf32>
    %33 = vector.shape_cast %32 : vector<1x8x1xf32> to vector<8x1xf32>
    %34 = vector.broadcast %33 : vector<8x1xf32> to vector<8x512xf32>
    %35 = vector.broadcast %0 : vector<1x512xf32> to vector<8x512xf32>
    %36 = arith.mulf %34, %35 : vector<8x512xf32>
    %37 = vector.broadcast %1 : vector<1x512xf32> to vector<8x512xf32>
    %38 = arith.addf %37, %36 : vector<8x512xf32>
    %cst_15 = arith.constant dense<0.000000e+00> : vector<8x512xf32>
    %39 = tpu.matmul %31, %2, %cst_15 {dimension_numbers = #tpu.dot_dimension_numbers<[1], [0], [0], [1], [0, 0, 1, 1], [], []>} : vector<8x128xf32>, vector<128x512xf32>, vector<8x512xf32> -> vector<8x512xf32>
    %40 = arith.addf %38, %39 : vector<8x512xf32>
    %41 = vector.extract_strided_slice %40 {offsets = [0, 0], sizes = [8, 384], strides = [1, 1]} : vector<8x512xf32> to vector<8x384xf32>
    %cst_16 = arith.constant 5.000000e-01 : f32
    %42 = vector.broadcast %cst_16 : f32 to vector<8x384xf32>
    %43 = arith.mulf %42, %41 : vector<8x384xf32>
    %44 = math.tanh %43 : vector<8x384xf32>
    %cst_17 = arith.constant 1.000000e+00 : f32
    %45 = vector.broadcast %cst_17 : f32 to vector<8x384xf32>
    %46 = arith.addf %44, %45 : vector<8x384xf32>
    %cst_18 = arith.constant 5.000000e-01 : f32
    %47 = vector.broadcast %cst_18 : f32 to vector<8x384xf32>
    %48 = arith.mulf %47, %46 : vector<8x384xf32>
    %49 = vector.extract_strided_slice %40 {offsets = [0, 384], sizes = [8, 128], strides = [1, 1]} : vector<8x512xf32> to vector<8x128xf32>
    %50 = math.tanh %49 : vector<8x128xf32>
    %51 = vector.extract_strided_slice %48 {offsets = [0, 0], sizes = [8, 128], strides = [1, 1]} : vector<8x384xf32> to vector<8x128xf32>
    %52 = vector.extract_strided_slice %48 {offsets = [0, 128], sizes = [8, 128], strides = [1, 1]} : vector<8x384xf32> to vector<8x128xf32>
    %53 = vector.extract_strided_slice %48 {offsets = [0, 256], sizes = [8, 128], strides = [1, 1]} : vector<8x384xf32> to vector<8x128xf32>
    %54 = arith.mulf %52, %29 : vector<8x128xf32>
    %55 = arith.mulf %51, %50 : vector<8x128xf32>
    %56 = arith.addf %54, %55 : vector<8x128xf32>
    %57 = math.tanh %56 : vector<8x128xf32>
    %58 = arith.mulf %53, %57 : vector<8x128xf32>
    %c2 = arith.constant 2 : index
    %c0_19 = arith.constant 0 : index
    %c0_20 = arith.constant 0 : index
    %59 = vector.load %arg0[%c2, %c0_19, %c0_20] : memref<8x8x1xf32, #tpu.memory_space<vmem>>, vector<1x8x1xf32>
    %60 = vector.shape_cast %59 : vector<1x8x1xf32> to vector<8x1xf32>
    %61 = vector.broadcast %60 : vector<8x1xf32> to vector<8x512xf32>
    %62 = vector.broadcast %0 : vector<1x512xf32> to vector<8x512xf32>
    %63 = arith.mulf %61, %62 : vector<8x512xf32>
    %64 = vector.broadcast %1 : vector<1x512xf32> to vector<8x512xf32>
    %65 = arith.addf %64, %63 : vector<8x512xf32>
    %cst_21 = arith.constant dense<0.000000e+00> : vector<8x512xf32>
    %66 = tpu.matmul %58, %2, %cst_21 {dimension_numbers = #tpu.dot_dimension_numbers<[1], [0], [0], [1], [0, 0, 1, 1], [], []>} : vector<8x128xf32>, vector<128x512xf32>, vector<8x512xf32> -> vector<8x512xf32>
    %67 = arith.addf %65, %66 : vector<8x512xf32>
    %68 = vector.extract_strided_slice %67 {offsets = [0, 0], sizes = [8, 384], strides = [1, 1]} : vector<8x512xf32> to vector<8x384xf32>
    %cst_22 = arith.constant 5.000000e-01 : f32
    %69 = vector.broadcast %cst_22 : f32 to vector<8x384xf32>
    %70 = arith.mulf %69, %68 : vector<8x384xf32>
    %71 = math.tanh %70 : vector<8x384xf32>
    %cst_23 = arith.constant 1.000000e+00 : f32
    %72 = vector.broadcast %cst_23 : f32 to vector<8x384xf32>
    %73 = arith.addf %71, %72 : vector<8x384xf32>
    %cst_24 = arith.constant 5.000000e-01 : f32
    %74 = vector.broadcast %cst_24 : f32 to vector<8x384xf32>
    %75 = arith.mulf %74, %73 : vector<8x384xf32>
    %76 = vector.extract_strided_slice %67 {offsets = [0, 384], sizes = [8, 128], strides = [1, 1]} : vector<8x512xf32> to vector<8x128xf32>
    %77 = math.tanh %76 : vector<8x128xf32>
    %78 = vector.extract_strided_slice %75 {offsets = [0, 0], sizes = [8, 128], strides = [1, 1]} : vector<8x384xf32> to vector<8x128xf32>
    %79 = vector.extract_strided_slice %75 {offsets = [0, 128], sizes = [8, 128], strides = [1, 1]} : vector<8x384xf32> to vector<8x128xf32>
    %80 = vector.extract_strided_slice %75 {offsets = [0, 256], sizes = [8, 128], strides = [1, 1]} : vector<8x384xf32> to vector<8x128xf32>
    %81 = arith.mulf %79, %56 : vector<8x128xf32>
    %82 = arith.mulf %78, %77 : vector<8x128xf32>
    %83 = arith.addf %81, %82 : vector<8x128xf32>
    %84 = math.tanh %83 : vector<8x128xf32>
    %85 = arith.mulf %80, %84 : vector<8x128xf32>
    %c3 = arith.constant 3 : index
    %c0_25 = arith.constant 0 : index
    %c0_26 = arith.constant 0 : index
    %86 = vector.load %arg0[%c3, %c0_25, %c0_26] : memref<8x8x1xf32, #tpu.memory_space<vmem>>, vector<1x8x1xf32>
    %87 = vector.shape_cast %86 : vector<1x8x1xf32> to vector<8x1xf32>
    %88 = vector.broadcast %87 : vector<8x1xf32> to vector<8x512xf32>
    %89 = vector.broadcast %0 : vector<1x512xf32> to vector<8x512xf32>
    %90 = arith.mulf %88, %89 : vector<8x512xf32>
    %91 = vector.broadcast %1 : vector<1x512xf32> to vector<8x512xf32>
    %92 = arith.addf %91, %90 : vector<8x512xf32>
    %cst_27 = arith.constant dense<0.000000e+00> : vector<8x512xf32>
    %93 = tpu.matmul %85, %2, %cst_27 {dimension_numbers = #tpu.dot_dimension_numbers<[1], [0], [0], [1], [0, 0, 1, 1], [], []>} : vector<8x128xf32>, vector<128x512xf32>, vector<8x512xf32> -> vector<8x512xf32>
    %94 = arith.addf %92, %93 : vector<8x512xf32>
    %95 = vector.extract_strided_slice %94 {offsets = [0, 0], sizes = [8, 384], strides = [1, 1]} : vector<8x512xf32> to vector<8x384xf32>
    %cst_28 = arith.constant 5.000000e-01 : f32
    %96 = vector.broadcast %cst_28 : f32 to vector<8x384xf32>
    %97 = arith.mulf %96, %95 : vector<8x384xf32>
    %98 = math.tanh %97 : vector<8x384xf32>
    %cst_29 = arith.constant 1.000000e+00 : f32
    %99 = vector.broadcast %cst_29 : f32 to vector<8x384xf32>
    %100 = arith.addf %98, %99 : vector<8x384xf32>
    %cst_30 = arith.constant 5.000000e-01 : f32
    %101 = vector.broadcast %cst_30 : f32 to vector<8x384xf32>
    %102 = arith.mulf %101, %100 : vector<8x384xf32>
    %103 = vector.extract_strided_slice %94 {offsets = [0, 384], sizes = [8, 128], strides = [1, 1]} : vector<8x512xf32> to vector<8x128xf32>
    %104 = math.tanh %103 : vector<8x128xf32>
    %105 = vector.extract_strided_slice %102 {offsets = [0, 0], sizes = [8, 128], strides = [1, 1]} : vector<8x384xf32> to vector<8x128xf32>
    %106 = vector.extract_strided_slice %102 {offsets = [0, 128], sizes = [8, 128], strides = [1, 1]} : vector<8x384xf32> to vector<8x128xf32>
    %107 = vector.extract_strided_slice %102 {offsets = [0, 256], sizes = [8, 128], strides = [1, 1]} : vector<8x384xf32> to vector<8x128xf32>
    %108 = arith.mulf %106, %83 : vector<8x128xf32>
    %109 = arith.mulf %105, %104 : vector<8x128xf32>
    %110 = arith.addf %108, %109 : vector<8x128xf32>
    %111 = math.tanh %110 : vector<8x128xf32>
    %112 = arith.mulf %107, %111 : vector<8x128xf32>
    %c4 = arith.constant 4 : index
    %c0_31 = arith.constant 0 : index
    %c0_32 = arith.constant 0 : index
    %113 = vector.load %arg0[%c4, %c0_31, %c0_32] : memref<8x8x1xf32, #tpu.memory_space<vmem>>, vector<1x8x1xf32>
    %114 = vector.shape_cast %113 : vector<1x8x1xf32> to vector<8x1xf32>
    %115 = vector.broadcast %114 : vector<8x1xf32> to vector<8x512xf32>
    %116 = vector.broadcast %0 : vector<1x512xf32> to vector<8x512xf32>
    %117 = arith.mulf %115, %116 : vector<8x512xf32>
    %118 = vector.broadcast %1 : vector<1x512xf32> to vector<8x512xf32>
    %119 = arith.addf %118, %117 : vector<8x512xf32>
    %cst_33 = arith.constant dense<0.000000e+00> : vector<8x512xf32>
    %120 = tpu.matmul %112, %2, %cst_33 {dimension_numbers = #tpu.dot_dimension_numbers<[1], [0], [0], [1], [0, 0, 1, 1], [], []>} : vector<8x128xf32>, vector<128x512xf32>, vector<8x512xf32> -> vector<8x512xf32>
    %121 = arith.addf %119, %120 : vector<8x512xf32>
    %122 = vector.extract_strided_slice %121 {offsets = [0, 0], sizes = [8, 384], strides = [1, 1]} : vector<8x512xf32> to vector<8x384xf32>
    %cst_34 = arith.constant 5.000000e-01 : f32
    %123 = vector.broadcast %cst_34 : f32 to vector<8x384xf32>
    %124 = arith.mulf %123, %122 : vector<8x384xf32>
    %125 = math.tanh %124 : vector<8x384xf32>
    %cst_35 = arith.constant 1.000000e+00 : f32
    %126 = vector.broadcast %cst_35 : f32 to vector<8x384xf32>
    %127 = arith.addf %125, %126 : vector<8x384xf32>
    %cst_36 = arith.constant 5.000000e-01 : f32
    %128 = vector.broadcast %cst_36 : f32 to vector<8x384xf32>
    %129 = arith.mulf %128, %127 : vector<8x384xf32>
    %130 = vector.extract_strided_slice %121 {offsets = [0, 384], sizes = [8, 128], strides = [1, 1]} : vector<8x512xf32> to vector<8x128xf32>
    %131 = math.tanh %130 : vector<8x128xf32>
    %132 = vector.extract_strided_slice %129 {offsets = [0, 0], sizes = [8, 128], strides = [1, 1]} : vector<8x384xf32> to vector<8x128xf32>
    %133 = vector.extract_strided_slice %129 {offsets = [0, 128], sizes = [8, 128], strides = [1, 1]} : vector<8x384xf32> to vector<8x128xf32>
    %134 = vector.extract_strided_slice %129 {offsets = [0, 256], sizes = [8, 128], strides = [1, 1]} : vector<8x384xf32> to vector<8x128xf32>
    %135 = arith.mulf %133, %110 : vector<8x128xf32>
    %136 = arith.mulf %132, %131 : vector<8x128xf32>
    %137 = arith.addf %135, %136 : vector<8x128xf32>
    %138 = math.tanh %137 : vector<8x128xf32>
    %139 = arith.mulf %134, %138 : vector<8x128xf32>
    %c5 = arith.constant 5 : index
    %c0_37 = arith.constant 0 : index
    %c0_38 = arith.constant 0 : index
    %140 = vector.load %arg0[%c5, %c0_37, %c0_38] : memref<8x8x1xf32, #tpu.memory_space<vmem>>, vector<1x8x1xf32>
    %141 = vector.shape_cast %140 : vector<1x8x1xf32> to vector<8x1xf32>
    %142 = vector.broadcast %141 : vector<8x1xf32> to vector<8x512xf32>
    %143 = vector.broadcast %0 : vector<1x512xf32> to vector<8x512xf32>
    %144 = arith.mulf %142, %143 : vector<8x512xf32>
    %145 = vector.broadcast %1 : vector<1x512xf32> to vector<8x512xf32>
    %146 = arith.addf %145, %144 : vector<8x512xf32>
    %cst_39 = arith.constant dense<0.000000e+00> : vector<8x512xf32>
    %147 = tpu.matmul %139, %2, %cst_39 {dimension_numbers = #tpu.dot_dimension_numbers<[1], [0], [0], [1], [0, 0, 1, 1], [], []>} : vector<8x128xf32>, vector<128x512xf32>, vector<8x512xf32> -> vector<8x512xf32>
    %148 = arith.addf %146, %147 : vector<8x512xf32>
    %149 = vector.extract_strided_slice %148 {offsets = [0, 0], sizes = [8, 384], strides = [1, 1]} : vector<8x512xf32> to vector<8x384xf32>
    %cst_40 = arith.constant 5.000000e-01 : f32
    %150 = vector.broadcast %cst_40 : f32 to vector<8x384xf32>
    %151 = arith.mulf %150, %149 : vector<8x384xf32>
    %152 = math.tanh %151 : vector<8x384xf32>
    %cst_41 = arith.constant 1.000000e+00 : f32
    %153 = vector.broadcast %cst_41 : f32 to vector<8x384xf32>
    %154 = arith.addf %152, %153 : vector<8x384xf32>
    %cst_42 = arith.constant 5.000000e-01 : f32
    %155 = vector.broadcast %cst_42 : f32 to vector<8x384xf32>
    %156 = arith.mulf %155, %154 : vector<8x384xf32>
    %157 = vector.extract_strided_slice %148 {offsets = [0, 384], sizes = [8, 128], strides = [1, 1]} : vector<8x512xf32> to vector<8x128xf32>
    %158 = math.tanh %157 : vector<8x128xf32>
    %159 = vector.extract_strided_slice %156 {offsets = [0, 0], sizes = [8, 128], strides = [1, 1]} : vector<8x384xf32> to vector<8x128xf32>
    %160 = vector.extract_strided_slice %156 {offsets = [0, 128], sizes = [8, 128], strides = [1, 1]} : vector<8x384xf32> to vector<8x128xf32>
    %161 = vector.extract_strided_slice %156 {offsets = [0, 256], sizes = [8, 128], strides = [1, 1]} : vector<8x384xf32> to vector<8x128xf32>
    %162 = arith.mulf %160, %137 : vector<8x128xf32>
    %163 = arith.mulf %159, %158 : vector<8x128xf32>
    %164 = arith.addf %162, %163 : vector<8x128xf32>
    %165 = math.tanh %164 : vector<8x128xf32>
    %166 = arith.mulf %161, %165 : vector<8x128xf32>
    %c6 = arith.constant 6 : index
    %c0_43 = arith.constant 0 : index
    %c0_44 = arith.constant 0 : index
    %167 = vector.load %arg0[%c6, %c0_43, %c0_44] : memref<8x8x1xf32, #tpu.memory_space<vmem>>, vector<1x8x1xf32>
    %168 = vector.shape_cast %167 : vector<1x8x1xf32> to vector<8x1xf32>
    %169 = vector.broadcast %168 : vector<8x1xf32> to vector<8x512xf32>
    %170 = vector.broadcast %0 : vector<1x512xf32> to vector<8x512xf32>
    %171 = arith.mulf %169, %170 : vector<8x512xf32>
    %172 = vector.broadcast %1 : vector<1x512xf32> to vector<8x512xf32>
    %173 = arith.addf %172, %171 : vector<8x512xf32>
    %cst_45 = arith.constant dense<0.000000e+00> : vector<8x512xf32>
    %174 = tpu.matmul %166, %2, %cst_45 {dimension_numbers = #tpu.dot_dimension_numbers<[1], [0], [0], [1], [0, 0, 1, 1], [], []>} : vector<8x128xf32>, vector<128x512xf32>, vector<8x512xf32> -> vector<8x512xf32>
    %175 = arith.addf %173, %174 : vector<8x512xf32>
    %176 = vector.extract_strided_slice %175 {offsets = [0, 0], sizes = [8, 384], strides = [1, 1]} : vector<8x512xf32> to vector<8x384xf32>
    %cst_46 = arith.constant 5.000000e-01 : f32
    %177 = vector.broadcast %cst_46 : f32 to vector<8x384xf32>
    %178 = arith.mulf %177, %176 : vector<8x384xf32>
    %179 = math.tanh %178 : vector<8x384xf32>
    %cst_47 = arith.constant 1.000000e+00 : f32
    %180 = vector.broadcast %cst_47 : f32 to vector<8x384xf32>
    %181 = arith.addf %179, %180 : vector<8x384xf32>
    %cst_48 = arith.constant 5.000000e-01 : f32
    %182 = vector.broadcast %cst_48 : f32 to vector<8x384xf32>
    %183 = arith.mulf %182, %181 : vector<8x384xf32>
    %184 = vector.extract_strided_slice %175 {offsets = [0, 384], sizes = [8, 128], strides = [1, 1]} : vector<8x512xf32> to vector<8x128xf32>
    %185 = math.tanh %184 : vector<8x128xf32>
    %186 = vector.extract_strided_slice %183 {offsets = [0, 0], sizes = [8, 128], strides = [1, 1]} : vector<8x384xf32> to vector<8x128xf32>
    %187 = vector.extract_strided_slice %183 {offsets = [0, 128], sizes = [8, 128], strides = [1, 1]} : vector<8x384xf32> to vector<8x128xf32>
    %188 = vector.extract_strided_slice %183 {offsets = [0, 256], sizes = [8, 128], strides = [1, 1]} : vector<8x384xf32> to vector<8x128xf32>
    %189 = arith.mulf %187, %164 : vector<8x128xf32>
    %190 = arith.mulf %186, %185 : vector<8x128xf32>
    %191 = arith.addf %189, %190 : vector<8x128xf32>
    %192 = math.tanh %191 : vector<8x128xf32>
    %193 = arith.mulf %188, %192 : vector<8x128xf32>
    %c7 = arith.constant 7 : index
    %c0_49 = arith.constant 0 : index
    %c0_50 = arith.constant 0 : index
    %194 = vector.load %arg0[%c7, %c0_49, %c0_50] : memref<8x8x1xf32, #tpu.memory_space<vmem>>, vector<1x8x1xf32>
    %195 = vector.shape_cast %194 : vector<1x8x1xf32> to vector<8x1xf32>
    %196 = vector.broadcast %195 : vector<8x1xf32> to vector<8x512xf32>
    %197 = vector.broadcast %0 : vector<1x512xf32> to vector<8x512xf32>
    %198 = arith.mulf %196, %197 : vector<8x512xf32>
    %199 = vector.broadcast %1 : vector<1x512xf32> to vector<8x512xf32>
    %200 = arith.addf %199, %198 : vector<8x512xf32>
    %cst_51 = arith.constant dense<0.000000e+00> : vector<8x512xf32>
    %201 = tpu.matmul %193, %2, %cst_51 {dimension_numbers = #tpu.dot_dimension_numbers<[1], [0], [0], [1], [0, 0, 1, 1], [], []>} : vector<8x128xf32>, vector<128x512xf32>, vector<8x512xf32> -> vector<8x512xf32>
    %202 = arith.addf %200, %201 : vector<8x512xf32>
    %203 = vector.extract_strided_slice %202 {offsets = [0, 0], sizes = [8, 384], strides = [1, 1]} : vector<8x512xf32> to vector<8x384xf32>
    %cst_52 = arith.constant 5.000000e-01 : f32
    %204 = vector.broadcast %cst_52 : f32 to vector<8x384xf32>
    %205 = arith.mulf %204, %203 : vector<8x384xf32>
    %206 = math.tanh %205 : vector<8x384xf32>
    %cst_53 = arith.constant 1.000000e+00 : f32
    %207 = vector.broadcast %cst_53 : f32 to vector<8x384xf32>
    %208 = arith.addf %206, %207 : vector<8x384xf32>
    %cst_54 = arith.constant 5.000000e-01 : f32
    %209 = vector.broadcast %cst_54 : f32 to vector<8x384xf32>
    %210 = arith.mulf %209, %208 : vector<8x384xf32>
    %211 = vector.extract_strided_slice %202 {offsets = [0, 384], sizes = [8, 128], strides = [1, 1]} : vector<8x512xf32> to vector<8x128xf32>
    %212 = math.tanh %211 : vector<8x128xf32>
    %213 = vector.extract_strided_slice %210 {offsets = [0, 0], sizes = [8, 128], strides = [1, 1]} : vector<8x384xf32> to vector<8x128xf32>
    %214 = vector.extract_strided_slice %210 {offsets = [0, 128], sizes = [8, 128], strides = [1, 1]} : vector<8x384xf32> to vector<8x128xf32>
    %215 = vector.extract_strided_slice %210 {offsets = [0, 256], sizes = [8, 128], strides = [1, 1]} : vector<8x384xf32> to vector<8x128xf32>
    %216 = arith.mulf %214, %191 : vector<8x128xf32>
    %217 = arith.mulf %213, %212 : vector<8x128xf32>
    %218 = arith.addf %216, %217 : vector<8x128xf32>
    %219 = math.tanh %218 : vector<8x128xf32>
    %220 = arith.mulf %215, %219 : vector<8x128xf32>
    %c0_55 = arith.constant 0 : index
    %c0_56 = arith.constant 0 : index
    %221 = vector.load %arg4[%c0_55, %c0_56] : memref<128x128xf32, #tpu.memory_space<vmem>>, vector<128x128xf32>
    %cst_57 = arith.constant dense<0.000000e+00> : vector<8x128xf32>
    %222 = tpu.matmul %220, %221, %cst_57 {dimension_numbers = #tpu.dot_dimension_numbers<[1], [0], [0], [1], [0, 0, 1, 1], [], []>} : vector<8x128xf32>, vector<128x128xf32>, vector<8x128xf32> -> vector<8x128xf32>
    %c0_58 = arith.constant 0 : index
    %c0_59 = arith.constant 0 : index
    %223 = vector.load %arg5[%c0_58, %c0_59] : memref<1x128xf32, #tpu.memory_space<vmem>>, vector<1x128xf32>
    %224 = vector.broadcast %223 : vector<1x128xf32> to vector<8x128xf32>
    %225 = arith.addf %222, %224 : vector<8x128xf32>
    %c0_60 = arith.constant 0 : index
    %c0_61 = arith.constant 0 : index
    %226 = vector.load %arg6[%c0_60, %c0_61] : memref<8x128xf32, #tpu.memory_space<vmem>>, vector<8x128xf32>
    tpu.vector_store %arg6[%c0_60, %c0_61], %225 {strides = array<i32>} : memref<8x128xf32, #tpu.memory_space<vmem>>, vector<8x128xf32>,
    return
  }
}

</mosaic_0001>

<llo_original>
// kernel: lstm_model_forward.1
$region0: #{lstm_model_forward.1}
  #allocation0 [shape = 'u32[]', space=smem, size = 0x4, offset = 0x4, fixed_abs, tag = 'smem constant byte address 0x4 - core index']
  #allocation1 [shape = 'u32[72,128]{1,0:T(1,128)}', space=vmem, size = 0x9000, scoped, tag = 'internal scratch']
  %s0 = inlined_call_operand.vmem [shape: f32[8,8,1], index: 0, kind: input, shape index: {}]
  %s1 = inlined_call_operand.vmem [shape: f32[1,512], index: 1, kind: input, shape index: {}]
  %s2 = inlined_call_operand.hbm [shape: f32[128,512], index: 2, kind: input, shape index: {}]
  %s3 = inlined_call_operand.vmem [shape: f32[1,512], index: 3, kind: input, shape index: {}]
  %s4 = inlined_call_operand.hbm [shape: f32[128,128], index: 4, kind: input, shape index: {}]
  %s5 = inlined_call_operand.vmem [shape: f32[1,128], index: 5, kind: input, shape index: {}]
  %s6 = inlined_call_operand.vmem [shape: f32[8,128], index: 6, kind: output, shape index: {}]
  %s7 = sld [smem:[#allocation0]]
  $region42: #{lstm_model_forward.1} parent=0
    _
  %s9 = ssub.s32 1, %s7
  %s10 = scalar_select 0, %s9, %s7
  $region1: #{lstm_model_forward.1} parent=0
    #allocation2 [shape = 'u8[262144]{0}', space=vmem, size = 0x40000, scoped, tag = 'input window, operand 2, single buffered']
    #allocation3 [shape = 's32[1]{0}', space=sflag, size = 0x4, scoped, tag = 'scoped memory for lstm_model_forward.1']
    #allocation4 [shape = 'u8[65536]{0}', space=vmem, size = 0x10000, scoped, tag = 'input window, operand 4, single buffered']
    #allocation5 [shape = 's32[1]{0}', space=sflag, size = 0x4, scoped, tag = 'scoped memory for lstm_model_forward.1']
    %11 = vsyncpa [#allocation3], 0
    %12 = vsyncpa [#allocation5], 0
    // Predicated region
    $region2: #{lstm_model_forward.1} parent=1 // pred_check
      _
    $region3: #{lstm_model_forward.1} parent=1 // pred_check_branch
      %14 = sbr.rel (0) target = $region5
    $region4: #{lstm_model_forward.1} parent=1 // pred_region
      _
    $region5: #{lstm_model_forward.1} parent=1 // pred_fallthru
      _
    // Predicated region
    $region6: #{lstm_model_forward.1} parent=1 // pred_check
      _
    $region7: #{lstm_model_forward.1} parent=1 // pred_check_branch
      %16 = sbr.rel (0) target = $region9
    $region8: #{lstm_model_forward.1} parent=1 // pred_region
      _
    $region9: #{lstm_model_forward.1} parent=1 // pred_fallthru
      _
    // Predicated region
    $region10: #{lstm_model_forward.1} parent=1 // pred_check
      _
    $region11: #{lstm_model_forward.1} parent=1 // pred_check_branch
      %18 = sbr.rel (0) target = $region13
    $region12: #{lstm_model_forward.1} parent=1 // pred_region
      %20 = vsyncadd [#allocation3], 0
      %s21 = sshll.u32 %s2, 4
      %s22 = int_to_ptr.hbm [resolvable:$true] %s21
      %s23 = sshll.u32 [#allocation2], 4
      %s24 = int_to_ptr.vmem [resolvable:$true] %s23
      %29 = dma.hbm_to_vmem [thread:$0]  %s22, 8192, %s24, [#allocation3], 512, 512, 32
    $region13: #{lstm_model_forward.1} parent=1 // pred_fallthru
      _
    // Predicated region
    $region14: #{lstm_model_forward.1} parent=1 // pred_check
      _
    $region15: #{lstm_model_forward.1} parent=1 // pred_check_branch
      %31 = sbr.rel (0) target = $region17
    $region16: #{lstm_model_forward.1} parent=1 // pred_region
      _
    $region17: #{lstm_model_forward.1} parent=1 // pred_fallthru
      _
    // Predicated region
    $region18: #{lstm_model_forward.1} parent=1 // pred_check
      _
    $region19: #{lstm_model_forward.1} parent=1 // pred_check_branch
      %33 = sbr.rel (0) target = $region21
    $region20: #{lstm_model_forward.1} parent=1 // pred_region
      %35 = vsyncadd [#allocation5], 0
      %s36 = sshll.u32 %s4, 4
      %s37 = int_to_ptr.hbm [resolvable:$true] %s36
      %s38 = sshll.u32 [#allocation4], 4
      %s39 = int_to_ptr.vmem [resolvable:$true] %s38
      %44 = dma.hbm_to_vmem [thread:$0]  %s37, 2048, %s39, [#allocation5], 128, 128, 8
    $region21: #{lstm_model_forward.1} parent=1 // pred_fallthru
      _
    // Predicated region
    $region22: #{lstm_model_forward.1} parent=1 // pred_check
      _
    $region23: #{lstm_model_forward.1} parent=1 // pred_check_branch
      %46 = sbr.rel (0) target = $region25
    $region24: #{lstm_model_forward.1} parent=1 // pred_region
      _
    $region25: #{lstm_model_forward.1} parent=1 // pred_fallthru
      _
    // Predicated region
    $region26: #{lstm_model_forward.1} parent=1 // pred_check
      _
    $region27: #{lstm_model_forward.1} parent=1 // pred_check_branch
      %48 = sbr.rel (0) target = $region29
    $region28: #{lstm_model_forward.1} parent=1 // pred_region
      %50 = dma.done [#allocation3], 8192
    $region29: #{lstm_model_forward.1} parent=1 // pred_fallthru
      _
    // Predicated region
    $region30: #{lstm_model_forward.1} parent=1 // pred_check
      _
    $region31: #{lstm_model_forward.1} parent=1 // pred_check_branch
      %52 = sbr.rel (0) target = $region33
    $region32: #{lstm_model_forward.1} parent=1 // pred_region
      %54 = dma.done [#allocation5], 2048
    $region33: #{lstm_model_forward.1} parent=1 // pred_fallthru
      _
    %v55 = vld [vmem:[%s1] sm:$0xf]
    %v56 = vld [vmem:[%s3] sm:$0xf]
    %v57 = vld [vmem:[#allocation2] sm:$0xff]
    %v58 = vld [vmem:[#allocation2 + $0x8] sm:$0xff]
    %v59 = vld [vmem:[#allocation2 + $0x10] sm:$0xff]
    %v60 = vld [vmem:[#allocation2 + $0x18] sm:$0xff]
    %v61 = vld [vmem:[#allocation2 + $0x20] sm:$0xff]
    %v62 = vld [vmem:[#allocation2 + $0x28] sm:$0xff]
    %v63 = vld [vmem:[#allocation2 + $0x30] sm:$0xff]
    %v64 = vld [vmem:[#allocation2 + $0x38] sm:$0xff]
    %v65 = vld [vmem:[#allocation2 + $0x40] sm:$0xff]
    %v66 = vld [vmem:[#allocation2 + $0x48] sm:$0xff]
    %v67 = vld [vmem:[#allocation2 + $0x50] sm:$0xff]
    %v68 = vld [vmem:[#allocation2 + $0x58] sm:$0xff]
    %v69 = vld [vmem:[#allocation2 + $0x60] sm:$0xff]
    %v70 = vld [vmem:[#allocation2 + $0x68] sm:$0xff]
    %v71 = vld [vmem:[#allocation2 + $0x70] sm:$0xff]
    %v72 = vld [vmem:[#allocation2 + $0x78] sm:$0xff]
    %v73 = vld [vmem:[#allocation2 + $0x80] sm:$0xff]
    %v74 = vld [vmem:[#allocation2 + $0x88] sm:$0xff]
    %v75 = vld [vmem:[#allocation2 + $0x90] sm:$0xff]
    %v76 = vld [vmem:[#allocation2 + $0x98] sm:$0xff]
    %v77 = vld [vmem:[#allocation2 + $0xa0] sm:$0xff]
    %v78 = vld [vmem:[#allocation2 + $0xa8] sm:$0xff]
    %v79 = vld [vmem:[#allocation2 + $0xb0] sm:$0xff]
    %v80 = vld [vmem:[#allocation2 + $0xb8] sm:$0xff]
    %v81 = vld [vmem:[#allocation2 + $0xc0] sm:$0xff]
    %v82 = vld [vmem:[#allocation2 + $0xc8] sm:$0xff]
    %v83 = vld [vmem:[#allocation2 + $0xd0] sm:$0xff]
    %v84 = vld [vmem:[#allocation2 + $0xd8] sm:$0xff]
    %v85 = vld [vmem:[#allocation2 + $0xe0] sm:$0xff]
    %v86 = vld [vmem:[#allocation2 + $0xe8] sm:$0xff]
    %v87 = vld [vmem:[#allocation2 + $0xf0] sm:$0xff]
    %v88 = vld [vmem:[#allocation2 + $0xf8] sm:$0xff]
    %v89 = vld [vmem:[#allocation2 + $0x100] sm:$0xff]
    %v90 = vld [vmem:[#allocation2 + $0x108] sm:$0xff]
    %v91 = vld [vmem:[#allocation2 + $0x110] sm:$0xff]
    %v92 = vld [vmem:[#allocation2 + $0x118] sm:$0xff]
    %v93 = vld [vmem:[#allocation2 + $0x120] sm:$0xff]
    %v94 = vld [vmem:[#allocation2 + $0x128] sm:$0xff]
    %v95 = vld [vmem:[#allocation2 + $0x130] sm:$0xff]
    %v96 = vld [vmem:[#allocation2 + $0x138] sm:$0xff]
    %v97 = vld [vmem:[#allocation2 + $0x140] sm:$0xff]
    %v98 = vld [vmem:[#allocation2 + $0x148] sm:$0xff]
    %v99 = vld [vmem:[#allocation2 + $0x150] sm:$0xff]
    %v100 = vld [vmem:[#allocation2 + $0x158] sm:$0xff]
    %v101 = vld [vmem:[#allocation2 + $0x160] sm:$0xff]
    %v102 = vld [vmem:[#allocation2 + $0x168] sm:$0xff]
    %v103 = vld [vmem:[#allocation2 + $0x170] sm:$0xff]
    %v104 = vld [vmem:[#allocation2 + $0x178] sm:$0xff]
    %v105 = vld [vmem:[#allocation2 + $0x180] sm:$0xff]
    %v106 = vld [vmem:[#allocation2 + $0x188] sm:$0xff]
    %v107 = vld [vmem:[#allocation2 + $0x190] sm:$0xff]
    %v108 = vld [vmem:[#allocation2 + $0x198] sm:$0xff]
    %v109 = vld [vmem:[#allocation2 + $0x1a0] sm:$0xff]
    %v110 = vld [vmem:[#allocation2 + $0x1a8] sm:$0xff]
    %v111 = vld [vmem:[#allocation2 + $0x1b0] sm:$0xff]
    %v112 = vld [vmem:[#allocation2 + $0x1b8] sm:$0xff]
    %v113 = vld [vmem:[#allocation2 + $0x1c0] sm:$0xff]
    %v114 = vld [vmem:[#allocation2 + $0x1c8] sm:$0xff]
    %v115 = vld [vmem:[#allocation2 + $0x1d0] sm:$0xff]
    %v116 = vld [vmem:[#allocation2 + $0x1d8] sm:$0xff]
    %v117 = vld [vmem:[#allocation2 + $0x1e0] sm:$0xff]
    %v118 = vld [vmem:[#allocation2 + $0x1e8] sm:$0xff]
    %v119 = vld [vmem:[#allocation2 + $0x1f0] sm:$0xff]
    %v120 = vld [vmem:[#allocation2 + $0x1f8] sm:$0xff]
    %v121 = vld [vmem:[%s0] sm:$0xff]
    %123 = vset.pattern.permute.xlu0 0
    %124 = vperm.xlu0 %123, %v121
    %v125 = vpop.permute.xlu0 %124
    %v128 = vperm.slane %v55, 0
    %v129 = vperm.slane %v55, 1
    %v130 = vperm.slane %v55, 2
    %v131 = vperm.slane %v55, 3
    %v136 = vmul.f32 %v125, %v128
    %v137 = vmul.f32 %v125, %v129
    %v138 = vmul.f32 %v125, %v130
    %v139 = vmul.f32 %v125, %v131
    %v141 = vperm.slane %v56, 0
    %v142 = vperm.slane %v56, 1
    %v143 = vperm.slane %v56, 2
    %v144 = vperm.slane %v56, 3
    %v149 = vadd.f32 %v141, %v136
    %v150 = vadd.f32 %v142, %v137
    %v151 = vadd.f32 %v143, %v138
    %v152 = vadd.f32 %v144, %v139
    %153 = vmatpush.msra.mxu0 %v117
    %154 = vmatpush.msra.mxu0 %v113
    %155 = vmatpush.msra.mxu0 %v109
    %156 = vmatpush.msra.mxu0 %v105
    %157 = vmatpush.msra.mxu0 %v101
    %158 = vmatpush.msra.mxu0 %v97
    %159 = vmatpush.msra.mxu0 %v93
    %160 = vmatpush.msra.mxu0 %v89
    %161 = vmatpush.msra.mxu0 %v85
    %162 = vmatpush.msra.mxu0 %v81
    %163 = vmatpush.msra.mxu0 %v77
    %164 = vmatpush.msra.mxu0 %v73
    %165 = vmatpush.msra.mxu0 %v69
    %166 = vmatpush.msra.mxu0 %v65
    %167 = vmatpush.msra.mxu0 %v61
    %168 = vmatpush.msra.mxu0 %v57
    %169 = vmatmul.f32.gmra.mxu0 0.0
    %v170 = vpop.f32.mrf.mxu0
    %v171 = vadd.f32 0.0, %v170
    %172 = vdwg.mxu0
    %173 = vmatpush.msra.mxu0 %v118
    %174 = vmatpush.msra.mxu0 %v114
    %175 = vmatpush.msra.mxu0 %v110
    %176 = vmatpush.msra.mxu0 %v106
    %177 = vmatpush.msra.mxu0 %v102
    %178 = vmatpush.msra.mxu0 %v98
    %179 = vmatpush.msra.mxu0 %v94
    %180 = vmatpush.msra.mxu0 %v90
    %181 = vmatpush.msra.mxu0 %v86
    %182 = vmatpush.msra.mxu0 %v82
    %183 = vmatpush.msra.mxu0 %v78
    %184 = vmatpush.msra.mxu0 %v74
    %185 = vmatpush.msra.mxu0 %v70
    %186 = vmatpush.msra.mxu0 %v66
    %187 = vmatpush.msra.mxu0 %v62
    %188 = vmatpush.msra.mxu0 %v58
    %189 = vmatmul.f32.gmra.mxu0 0.0
    %v190 = vpop.f32.mrf.mxu0
    %v191 = vadd.f32 0.0, %v190
    %192 = vdwg.mxu0
    %193 = vmatpush.msra.mxu0 %v119
    %194 = vmatpush.msra.mxu0 %v115
    %195 = vmatpush.msra.mxu0 %v111
    %196 = vmatpush.msra.mxu0 %v107
    %197 = vmatpush.msra.mxu0 %v103
    %198 = vmatpush.msra.mxu0 %v99
    %199 = vmatpush.msra.mxu0 %v95
    %200 = vmatpush.msra.mxu0 %v91
    %201 = vmatpush.msra.mxu0 %v87
    %202 = vmatpush.msra.mxu0 %v83
    %203 = vmatpush.msra.mxu0 %v79
    %204 = vmatpush.msra.mxu0 %v75
    %205 = vmatpush.msra.mxu0 %v71
    %206 = vmatpush.msra.mxu0 %v67
    %207 = vmatpush.msra.mxu0 %v63
    %208 = vmatpush.msra.mxu0 %v59
    %209 = vmatmul.f32.gmra.mxu0 0.0
    %v210 = vpop.f32.mrf.mxu0
    %v211 = vadd.f32 0.0, %v210
    %212 = vdwg.mxu0
    %213 = vmatpush.msra.mxu0 %v120
    %214 = vmatpush.msra.mxu0 %v116
    %215 = vmatpush.msra.mxu0 %v112
    %216 = vmatpush.msra.mxu0 %v108
    %217 = vmatpush.msra.mxu0 %v104
    %218 = vmatpush.msra.mxu0 %v100
    %219 = vmatpush.msra.mxu0 %v96
    %220 = vmatpush.msra.mxu0 %v92
    %221 = vmatpush.msra.mxu0 %v88
    %222 = vmatpush.msra.mxu0 %v84
    %223 = vmatpush.msra.mxu0 %v80
    %224 = vmatpush.msra.mxu0 %v76
    %225 = vmatpush.msra.mxu0 %v72
    %226 = vmatpush.msra.mxu0 %v68
    %227 = vmatpush.msra.mxu0 %v64
    %228 = vmatpush.msra.mxu0 %v60
    %229 = vmatmul.f32.gmra.mxu0 0.0
    %v230 = vpop.f32.mrf.mxu0
    %v231 = vadd.f32 0.0, %v230
    %232 = vdwg.mxu0
    %v233 = vadd.f32 %v149, %v171
    %v234 = vadd.f32 %v150, %v191
    %v235 = vadd.f32 %v151, %v211
    %v236 = vadd.f32 %v152, %v231
    %v237 = vmul.f32 %v233, 0.5
    %v238 = vmul.f32 %v234, 0.5
    %v239 = vmul.f32 %v235, 0.5
    %v240 = vtanh.pop %v237
    %v241 = vtanh.pop %v238
    %v242 = vtanh.pop %v239
    %v243 = vadd.f32 %v240, 1.0
    %v244 = vadd.f32 %v241, 1.0
    %v245 = vadd.f32 %v242, 1.0
    %v246 = vmul.f32 %v243, 0.5
    %v247 = vmul.f32 %v244, 0.5
    %v248 = vmul.f32 %v245, 0.5
    %v249 = vtanh.pop %v236
    %v250 = vmul.f32 %v247, 0.0
    %v251 = vmul.f32 %v246, %v249
    %v252 = vadd.f32 %v250, %v251
    %v253 = vtanh.pop %v252
    %v254 = vmul.f32 %v248, %v253
    %s255 = scalar_lea.vmem %s0, 8
    %v256 = vld [vmem:[%s255] sm:$0xff]
    %258 = vset.pattern.permute.xlu0 0
    %259 = vperm.xlu0 %258, %v256
    %v260 = vpop.permute.xlu0 %259
    %v262 = vmul.f32 %v260, %v128
    %v263 = vmul.f32 %v260, %v129
    %v264 = vmul.f32 %v260, %v130
    %v265 = vmul.f32 %v260, %v131
    %v266 = vadd.f32 %v141, %v262
    %v267 = vadd.f32 %v142, %v263
    %v268 = vadd.f32 %v143, %v264
    %v269 = vadd.f32 %v144, %v265
    %270 = vmatpush.msra.mxu0 %v117
    %271 = vmatpush.msra.mxu0 %v113
    %272 = vmatpush.msra.mxu0 %v109
    %273 = vmatpush.msra.mxu0 %v105
    %274 = vmatpush.msra.mxu0 %v101
    %275 = vmatpush.msra.mxu0 %v97
    %276 = vmatpush.msra.mxu0 %v93
    %277 = vmatpush.msra.mxu0 %v89
    %278 = vmatpush.msra.mxu0 %v85
    %279 = vmatpush.msra.mxu0 %v81
    %280 = vmatpush.msra.mxu0 %v77
    %281 = vmatpush.msra.mxu0 %v73
    %282 = vmatpush.msra.mxu0 %v69
    %283 = vmatpush.msra.mxu0 %v65
    %284 = vmatpush.msra.mxu0 %v61
    %285 = vmatpush.msra.mxu0 %v57
    %286 = vmatmul.f32.gmra.mxu0 %v254
    %v287 = vpop.f32.mrf.mxu0
    %v288 = vadd.f32 0.0, %v287
    %289 = vdwg.mxu0
    %290 = vmatpush.msra.mxu0 %v118
    %291 = vmatpush.msra.mxu0 %v114
    %292 = vmatpush.msra.mxu0 %v110
    %293 = vmatpush.msra.mxu0 %v106
    %294 = vmatpush.msra.mxu0 %v102
    %295 = vmatpush.msra.mxu0 %v98
    %296 = vmatpush.msra.mxu0 %v94
    %297 = vmatpush.msra.mxu0 %v90
    %298 = vmatpush.msra.mxu0 %v86
    %299 = vmatpush.msra.mxu0 %v82
    %300 = vmatpush.msra.mxu0 %v78
    %301 = vmatpush.msra.mxu0 %v74
    %302 = vmatpush.msra.mxu0 %v70
    %303 = vmatpush.msra.mxu0 %v66
    %304 = vmatpush.msra.mxu0 %v62
    %305 = vmatpush.msra.mxu0 %v58
    %306 = vmatmul.f32.gmra.mxu0 %v254
    %v307 = vpop.f32.mrf.mxu0
    %v308 = vadd.f32 0.0, %v307
    %309 = vdwg.mxu0
    %310 = vmatpush.msra.mxu0 %v119
    %311 = vmatpush.msra.mxu0 %v115
    %312 = vmatpush.msra.mxu0 %v111
    %313 = vmatpush.msra.mxu0 %v107
    %314 = vmatpush.msra.mxu0 %v103
    %315 = vmatpush.msra.mxu0 %v99
    %316 = vmatpush.msra.mxu0 %v95
    %317 = vmatpush.msra.mxu0 %v91
    %318 = vmatpush.msra.mxu0 %v87
    %319 = vmatpush.msra.mxu0 %v83
    %320 = vmatpush.msra.mxu0 %v79
    %321 = vmatpush.msra.mxu0 %v75
    %322 = vmatpush.msra.mxu0 %v71
    %323 = vmatpush.msra.mxu0 %v67
    %324 = vmatpush.msra.mxu0 %v63
    %325 = vmatpush.msra.mxu0 %v59
    %326 = vmatmul.f32.gmra.mxu0 %v254
    %v327 = vpop.f32.mrf.mxu0
    %v328 = vadd.f32 0.0, %v327
    %329 = vdwg.mxu0
    %330 = vmatpush.msra.mxu0 %v120
    %331 = vmatpush.msra.mxu0 %v116
    %332 = vmatpush.msra.mxu0 %v112
    %333 = vmatpush.msra.mxu0 %v108
    %334 = vmatpush.msra.mxu0 %v104
    %335 = vmatpush.msra.mxu0 %v100
    %336 = vmatpush.msra.mxu0 %v96
    %337 = vmatpush.msra.mxu0 %v92
    %338 = vmatpush.msra.mxu0 %v88
    %339 = vmatpush.msra.mxu0 %v84
    %340 = vmatpush.msra.mxu0 %v80
    %341 = vmatpush.msra.mxu0 %v76
    %342 = vmatpush.msra.mxu0 %v72
    %343 = vmatpush.msra.mxu0 %v68
    %344 = vmatpush.msra.mxu0 %v64
    %345 = vmatpush.msra.mxu0 %v60
    %346 = vmatmul.f32.gmra.mxu0 %v254
    %v347 = vpop.f32.mrf.mxu0
    %v348 = vadd.f32 0.0, %v347
    %349 = vdwg.mxu0
    %v350 = vadd.f32 %v266, %v288
    %v351 = vadd.f32 %v267, %v308
    %v352 = vadd.f32 %v268, %v328
    %v353 = vadd.f32 %v269, %v348
    %v354 = vmul.f32 %v350, 0.5
    %v355 = vmul.f32 %v351, 0.5
    %v356 = vmul.f32 %v352, 0.5
    %v357 = vtanh.pop %v354
    %v358 = vtanh.pop %v355
    %v359 = vtanh.pop %v356
    %v360 = vadd.f32 %v357, 1.0
    %v361 = vadd.f32 %v358, 1.0
    %v362 = vadd.f32 %v359, 1.0
    %v363 = vmul.f32 %v360, 0.5
    %v364 = vmul.f32 %v361, 0.5
    %v365 = vmul.f32 %v362, 0.5
    %v366 = vtanh.pop %v353
    %v367 = vmul.f32 %v364, %v252
    %v368 = vmul.f32 %v363, %v366
    %v369 = vadd.f32 %v367, %v368
    %v370 = vtanh.pop %v369
    %v371 = vmul.f32 %v365, %v370
    %s372 = scalar_lea.vmem %s0, 16
    %v373 = vld [vmem:[%s372] sm:$0xff]
    %375 = vset.pattern.permute.xlu0 0
    %376 = vperm.xlu0 %375, %v373
    %v377 = vpop.permute.xlu0 %376
    %v379 = vmul.f32 %v377, %v128
    %v380 = vmul.f32 %v377, %v129
    %v381 = vmul.f32 %v377, %v130
    %v382 = vmul.f32 %v377, %v131
    %v383 = vadd.f32 %v141, %v379
    %v384 = vadd.f32 %v142, %v380
    %v385 = vadd.f32 %v143, %v381
    %v386 = vadd.f32 %v144, %v382
    %387 = vmatpush.msra.mxu0 %v117
    %388 = vmatpush.msra.mxu0 %v113
    %389 = vmatpush.msra.mxu0 %v109
    %390 = vmatpush.msra.mxu0 %v105
    %391 = vmatpush.msra.mxu0 %v101
    %392 = vmatpush.msra.mxu0 %v97
    %393 = vmatpush.msra.mxu0 %v93
    %394 = vmatpush.msra.mxu0 %v89
    %395 = vmatpush.msra.mxu0 %v85
    %396 = vmatpush.msra.mxu0 %v81
    %397 = vmatpush.msra.mxu0 %v77
    %398 = vmatpush.msra.mxu0 %v73
    %399 = vmatpush.msra.mxu0 %v69
    %400 = vmatpush.msra.mxu0 %v65
    %401 = vmatpush.msra.mxu0 %v61
    %402 = vmatpush.msra.mxu0 %v57
    %403 = vmatmul.f32.gmra.mxu0 %v371
    %v404 = vpop.f32.mrf.mxu0
    %v405 = vadd.f32 0.0, %v404
    %406 = vdwg.mxu0
    %407 = vmatpush.msra.mxu0 %v118
    %408 = vmatpush.msra.mxu0 %v114
    %409 = vmatpush.msra.mxu0 %v110
    %410 = vmatpush.msra.mxu0 %v106
    %411 = vmatpush.msra.mxu0 %v102
    %412 = vmatpush.msra.mxu0 %v98
    %413 = vmatpush.msra.mxu0 %v94
    %414 = vmatpush.msra.mxu0 %v90
    %415 = vmatpush.msra.mxu0 %v86
    %416 = vmatpush.msra.mxu0 %v82
    %417 = vmatpush.msra.mxu0 %v78
    %418 = vmatpush.msra.mxu0 %v74
    %419 = vmatpush.msra.mxu0 %v70
    %420 = vmatpush.msra.mxu0 %v66
    %421 = vmatpush.msra.mxu0 %v62
    %422 = vmatpush.msra.mxu0 %v58
    %423 = vmatmul.f32.gmra.mxu0 %v371
    %v424 = vpop.f32.mrf.mxu0
    %v425 = vadd.f32 0.0, %v424
    %426 = vdwg.mxu0
    %427 = vmatpush.msra.mxu0 %v119
    %428 = vmatpush.msra.mxu0 %v115
    %429 = vmatpush.msra.mxu0 %v111
    %430 = vmatpush.msra.mxu0 %v107
    %431 = vmatpush.msra.mxu0 %v103
    %432 = vmatpush.msra.mxu0 %v99
    %433 = vmatpush.msra.mxu0 %v95
    %434 = vmatpush.msra.mxu0 %v91
    %435 = vmatpush.msra.mxu0 %v87
    %436 = vmatpush.msra.mxu0 %v83
    %437 = vmatpush.msra.mxu0 %v79
    %438 = vmatpush.msra.mxu0 %v75
    %439 = vmatpush.msra.mxu0 %v71
    %440 = vmatpush.msra.mxu0 %v67
    %441 = vmatpush.msra.mxu0 %v63
    %442 = vmatpush.msra.mxu0 %v59
    %443 = vmatmul.f32.gmra.mxu0 %v371
    %v444 = vpop.f32.mrf.mxu0
    %v445 = vadd.f32 0.0, %v444
    %446 = vdwg.mxu0
    %447 = vmatpush.msra.mxu0 %v120
    %448 = vmatpush.msra.mxu0 %v116
    %449 = vmatpush.msra.mxu0 %v112
    %450 = vmatpush.msra.mxu0 %v108
    %451 = vmatpush.msra.mxu0 %v104
    %452 = vmatpush.msra.mxu0 %v100
    %453 = vmatpush.msra.mxu0 %v96
    %454 = vmatpush.msra.mxu0 %v92
    %455 = vmatpush.msra.mxu0 %v88
    %456 = vmatpush.msra.mxu0 %v84
    %457 = vmatpush.msra.mxu0 %v80
    %458 = vmatpush.msra.mxu0 %v76
    %459 = vmatpush.msra.mxu0 %v72
    %460 = vmatpush.msra.mxu0 %v68
    %461 = vmatpush.msra.mxu0 %v64
    %462 = vmatpush.msra.mxu0 %v60
    %463 = vmatmul.f32.gmra.mxu0 %v371
    %v464 = vpop.f32.mrf.mxu0
    %v465 = vadd.f32 0.0, %v464
    %466 = vdwg.mxu0
    %v467 = vadd.f32 %v383, %v405
    %v468 = vadd.f32 %v384, %v425
    %v469 = vadd.f32 %v385, %v445
    %v470 = vadd.f32 %v386, %v465
    %v471 = vmul.f32 %v467, 0.5
    %v472 = vmul.f32 %v468, 0.5
    %v473 = vmul.f32 %v469, 0.5
    %v474 = vtanh.pop %v471
    %v475 = vtanh.pop %v472
    %v476 = vtanh.pop %v473
    %v477 = vadd.f32 %v474, 1.0
    %v478 = vadd.f32 %v475, 1.0
    %v479 = vadd.f32 %v476, 1.0
    %v480 = vmul.f32 %v477, 0.5
    %v481 = vmul.f32 %v478, 0.5
    %v482 = vmul.f32 %v479, 0.5
    %v483 = vtanh.pop %v470
    %v484 = vmul.f32 %v481, %v369
    %v485 = vmul.f32 %v480, %v483
    %v486 = vadd.f32 %v484, %v485
    %v487 = vtanh.pop %v486
    %v488 = vmul.f32 %v482, %v487
    %s489 = scalar_lea.vmem %s0, 24
    %v490 = vld [vmem:[%s489] sm:$0xff]
    %492 = vset.pattern.permute.xlu0 0
    %493 = vperm.xlu0 %492, %v490
    %v494 = vpop.permute.xlu0 %493
    %v496 = vmul.f32 %v494, %v128
    %v497 = vmul.f32 %v494, %v129
    %v498 = vmul.f32 %v494, %v130
    %v499 = vmul.f32 %v494, %v131
    %v500 = vadd.f32 %v141, %v496
    %v501 = vadd.f32 %v142, %v497
    %v502 = vadd.f32 %v143, %v498
    %v503 = vadd.f32 %v144, %v499
    %504 = vmatpush.msra.mxu0 %v117
    %505 = vmatpush.msra.mxu0 %v113
    %506 = vmatpush.msra.mxu0 %v109
    %507 = vmatpush.msra.mxu0 %v105
    %508 = vmatpush.msra.mxu0 %v101
    %509 = vmatpush.msra.mxu0 %v97
    %510 = vmatpush.msra.mxu0 %v93
    %511 = vmatpush.msra.mxu0 %v89
    %512 = vmatpush.msra.mxu0 %v85
    %513 = vmatpush.msra.mxu0 %v81
    %514 = vmatpush.msra.mxu0 %v77
    %515 = vmatpush.msra.mxu0 %v73
    %516 = vmatpush.msra.mxu0 %v69
    %517 = vmatpush.msra.mxu0 %v65
    %518 = vmatpush.msra.mxu0 %v61
    %519 = vmatpush.msra.mxu0 %v57
    %520 = vmatmul.f32.gmra.mxu0 %v488
    %v521 = vpop.f32.mrf.mxu0
    %v522 = vadd.f32 0.0, %v521
    %523 = vdwg.mxu0
    %524 = vmatpush.msra.mxu0 %v118
    %525 = vmatpush.msra.mxu0 %v114
    %526 = vmatpush.msra.mxu0 %v110
    %527 = vmatpush.msra.mxu0 %v106
    %528 = vmatpush.msra.mxu0 %v102
    %529 = vmatpush.msra.mxu0 %v98
    %530 = vmatpush.msra.mxu0 %v94
    %531 = vmatpush.msra.mxu0 %v90
    %532 = vmatpush.msra.mxu0 %v86
    %533 = vmatpush.msra.mxu0 %v82
    %534 = vmatpush.msra.mxu0 %v78
    %535 = vmatpush.msra.mxu0 %v74
    %536 = vmatpush.msra.mxu0 %v70
    %537 = vmatpush.msra.mxu0 %v66
    %538 = vmatpush.msra.mxu0 %v62
    %539 = vmatpush.msra.mxu0 %v58
    %540 = vmatmul.f32.gmra.mxu0 %v488
    %v541 = vpop.f32.mrf.mxu0
    %v542 = vadd.f32 0.0, %v541
    %543 = vdwg.mxu0
    %544 = vmatpush.msra.mxu0 %v119
    %545 = vmatpush.msra.mxu0 %v115
    %546 = vmatpush.msra.mxu0 %v111
    %547 = vmatpush.msra.mxu0 %v107
    %548 = vmatpush.msra.mxu0 %v103
    %549 = vmatpush.msra.mxu0 %v99
    %550 = vmatpush.msra.mxu0 %v95
    %551 = vmatpush.msra.mxu0 %v91
    %552 = vmatpush.msra.mxu0 %v87
    %553 = vmatpush.msra.mxu0 %v83
    %554 = vmatpush.msra.mxu0 %v79
    %555 = vmatpush.msra.mxu0 %v75
    %556 = vmatpush.msra.mxu0 %v71
    %557 = vmatpush.msra.mxu0 %v67
    %558 = vmatpush.msra.mxu0 %v63
    %559 = vmatpush.msra.mxu0 %v59
    %560 = vmatmul.f32.gmra.mxu0 %v488
    %v561 = vpop.f32.mrf.mxu0
    %v562 = vadd.f32 0.0, %v561
    %563 = vdwg.mxu0
    %564 = vmatpush.msra.mxu0 %v120
    %565 = vmatpush.msra.mxu0 %v116
    %566 = vmatpush.msra.mxu0 %v112
    %567 = vmatpush.msra.mxu0 %v108
    %568 = vmatpush.msra.mxu0 %v104
    %569 = vmatpush.msra.mxu0 %v100
    %570 = vmatpush.msra.mxu0 %v96
    %571 = vmatpush.msra.mxu0 %v92
    %572 = vmatpush.msra.mxu0 %v88
    %573 = vmatpush.msra.mxu0 %v84
    %574 = vmatpush.msra.mxu0 %v80
    %575 = vmatpush.msra.mxu0 %v76
    %576 = vmatpush.msra.mxu0 %v72
    %577 = vmatpush.msra.mxu0 %v68
    %578 = vmatpush.msra.mxu0 %v64
    %579 = vmatpush.msra.mxu0 %v60
    %580 = vmatmul.f32.gmra.mxu0 %v488
    %v581 = vpop.f32.mrf.mxu0
    %v582 = vadd.f32 0.0, %v581
    %583 = vdwg.mxu0
    %v584 = vadd.f32 %v500, %v522
    %v585 = vadd.f32 %v501, %v542
    %v586 = vadd.f32 %v502, %v562
    %v587 = vadd.f32 %v503, %v582
    %v588 = vmul.f32 %v584, 0.5
    %v589 = vmul.f32 %v585, 0.5
    %v590 = vmul.f32 %v586, 0.5
    %v591 = vtanh.pop %v588
    %v592 = vtanh.pop %v589
    %v593 = vtanh.pop %v590
    %v594 = vadd.f32 %v591, 1.0
    %v595 = vadd.f32 %v592, 1.0
    %v596 = vadd.f32 %v593, 1.0
    %v597 = vmul.f32 %v594, 0.5
    %v598 = vmul.f32 %v595, 0.5
    %v599 = vmul.f32 %v596, 0.5
    %v600 = vtanh.pop %v587
    %v601 = vmul.f32 %v598, %v486
    %v602 = vmul.f32 %v597, %v600
    %v603 = vadd.f32 %v601, %v602
    %v604 = vtanh.pop %v603
    %v605 = vmul.f32 %v599, %v604
    %s606 = scalar_lea.vmem %s0, 32
    %v607 = vld [vmem:[%s606] sm:$0xff]
    %609 = vset.pattern.permute.xlu0 0
    %610 = vperm.xlu0 %609, %v607
    %v611 = vpop.permute.xlu0 %610
    %v613 = vmul.f32 %v611, %v128
    %v614 = vmul.f32 %v611, %v129
    %v615 = vmul.f32 %v611, %v130
    %v616 = vmul.f32 %v611, %v131
    %v617 = vadd.f32 %v141, %v613
    %v618 = vadd.f32 %v142, %v614
    %v619 = vadd.f32 %v143, %v615
    %v620 = vadd.f32 %v144, %v616
    %621 = vmatpush.msra.mxu0 %v117
    %622 = vmatpush.msra.mxu0 %v113
    %623 = vmatpush.msra.mxu0 %v109
    %624 = vmatpush.msra.mxu0 %v105
    %625 = vmatpush.msra.mxu0 %v101
    %626 = vmatpush.msra.mxu0 %v97
    %627 = vmatpush.msra.mxu0 %v93
    %628 = vmatpush.msra.mxu0 %v89
    %629 = vmatpush.msra.mxu0 %v85
    %630 = vmatpush.msra.mxu0 %v81
    %631 = vmatpush.msra.mxu0 %v77
    %632 = vmatpush.msra.mxu0 %v73
    %633 = vmatpush.msra.mxu0 %v69
    %634 = vmatpush.msra.mxu0 %v65
    %635 = vmatpush.msra.mxu0 %v61
    %636 = vmatpush.msra.mxu0 %v57
    %637 = vmatmul.f32.gmra.mxu0 %v605
    %v638 = vpop.f32.mrf.mxu0
    %v639 = vadd.f32 0.0, %v638
    %640 = vdwg.mxu0
    %641 = vmatpush.msra.mxu0 %v118
    %642 = vmatpush.msra.mxu0 %v114
    %643 = vmatpush.msra.mxu0 %v110
    %644 = vmatpush.msra.mxu0 %v106
    %645 = vmatpush.msra.mxu0 %v102
    %646 = vmatpush.msra.mxu0 %v98
    %647 = vmatpush.msra.mxu0 %v94
    %648 = vmatpush.msra.mxu0 %v90
    %649 = vmatpush.msra.mxu0 %v86
    %650 = vmatpush.msra.mxu0 %v82
    %651 = vmatpush.msra.mxu0 %v78
    %652 = vmatpush.msra.mxu0 %v74
    %653 = vmatpush.msra.mxu0 %v70
    %654 = vmatpush.msra.mxu0 %v66
    %655 = vmatpush.msra.mxu0 %v62
    %656 = vmatpush.msra.mxu0 %v58
    %657 = vmatmul.f32.gmra.mxu0 %v605
    %v658 = vpop.f32.mrf.mxu0
    %v659 = vadd.f32 0.0, %v658
    %660 = vdwg.mxu0
    %661 = vmatpush.msra.mxu0 %v119
    %662 = vmatpush.msra.mxu0 %v115
    %663 = vmatpush.msra.mxu0 %v111
    %664 = vmatpush.msra.mxu0 %v107
    %665 = vmatpush.msra.mxu0 %v103
    %666 = vmatpush.msra.mxu0 %v99
    %667 = vmatpush.msra.mxu0 %v95
    %668 = vmatpush.msra.mxu0 %v91
    %669 = vmatpush.msra.mxu0 %v87
    %670 = vmatpush.msra.mxu0 %v83
    %671 = vmatpush.msra.mxu0 %v79
    %672 = vmatpush.msra.mxu0 %v75
    %673 = vmatpush.msra.mxu0 %v71
    %674 = vmatpush.msra.mxu0 %v67
    %675 = vmatpush.msra.mxu0 %v63
    %676 = vmatpush.msra.mxu0 %v59
    %677 = vmatmul.f32.gmra.mxu0 %v605
    %v678 = vpop.f32.mrf.mxu0
    %v679 = vadd.f32 0.0, %v678
    %680 = vdwg.mxu0
    %681 = vmatpush.msra.mxu0 %v120
    %682 = vmatpush.msra.mxu0 %v116
    %683 = vmatpush.msra.mxu0 %v112
    %684 = vmatpush.msra.mxu0 %v108
    %685 = vmatpush.msra.mxu0 %v104
    %686 = vmatpush.msra.mxu0 %v100
    %687 = vmatpush.msra.mxu0 %v96
    %688 = vmatpush.msra.mxu0 %v92
    %689 = vmatpush.msra.mxu0 %v88
    %690 = vmatpush.msra.mxu0 %v84
    %691 = vmatpush.msra.mxu0 %v80
    %692 = vmatpush.msra.mxu0 %v76
    %693 = vmatpush.msra.mxu0 %v72
    %694 = vmatpush.msra.mxu0 %v68
    %695 = vmatpush.msra.mxu0 %v64
    %696 = vmatpush.msra.mxu0 %v60
    %697 = vmatmul.f32.gmra.mxu0 %v605
    %v698 = vpop.f32.mrf.mxu0
    %v699 = vadd.f32 0.0, %v698
    %700 = vdwg.mxu0
    %v701 = vadd.f32 %v617, %v639
    %v702 = vadd.f32 %v618, %v659
    %v703 = vadd.f32 %v619, %v679
    %v704 = vadd.f32 %v620, %v699
    %v705 = vmul.f32 %v701, 0.5
    %v706 = vmul.f32 %v702, 0.5
    %v707 = vmul.f32 %v703, 0.5
    %v708 = vtanh.pop %v705
    %v709 = vtanh.pop %v706
    %v710 = vtanh.pop %v707
    %v711 = vadd.f32 %v708, 1.0
    %v712 = vadd.f32 %v709, 1.0
    %v713 = vadd.f32 %v710, 1.0
    %v714 = vmul.f32 %v711, 0.5
    %v715 = vmul.f32 %v712, 0.5
    %v716 = vmul.f32 %v713, 0.5
    %v717 = vtanh.pop %v704
    %v718 = vmul.f32 %v715, %v603
    %v719 = vmul.f32 %v714, %v717
    %v720 = vadd.f32 %v718, %v719
    %v721 = vtanh.pop %v720
    %v722 = vmul.f32 %v716, %v721
    %s723 = scalar_lea.vmem %s0, 40
    %v724 = vld [vmem:[%s723] sm:$0xff]
    %726 = vset.pattern.permute.xlu0 0
    %727 = vperm.xlu0 %726, %v724
    %v728 = vpop.permute.xlu0 %727
    %v730 = vmul.f32 %v728, %v128
    %v731 = vmul.f32 %v728, %v129
    %v732 = vmul.f32 %v728, %v130
    %v733 = vmul.f32 %v728, %v131
    %v734 = vadd.f32 %v141, %v730
    %v735 = vadd.f32 %v142, %v731
    %v736 = vadd.f32 %v143, %v732
    %v737 = vadd.f32 %v144, %v733
    %738 = vmatpush.msra.mxu0 %v117
    %739 = vmatpush.msra.mxu0 %v113
    %740 = vmatpush.msra.mxu0 %v109
    %741 = vmatpush.msra.mxu0 %v105
    %742 = vmatpush.msra.mxu0 %v101
    %743 = vmatpush.msra.mxu0 %v97
    %744 = vmatpush.msra.mxu0 %v93
    %745 = vmatpush.msra.mxu0 %v89
    %746 = vmatpush.msra.mxu0 %v85
    %747 = vmatpush.msra.mxu0 %v81
    %748 = vmatpush.msra.mxu0 %v77
    %749 = vmatpush.msra.mxu0 %v73
    %750 = vmatpush.msra.mxu0 %v69
    %751 = vmatpush.msra.mxu0 %v65
    %752 = vmatpush.msra.mxu0 %v61
    %753 = vmatpush.msra.mxu0 %v57
    %754 = vmatmul.f32.gmra.mxu0 %v722
    %v755 = vpop.f32.mrf.mxu0
    %v756 = vadd.f32 0.0, %v755
    %757 = vdwg.mxu0
    %758 = vmatpush.msra.mxu0 %v118
    %759 = vmatpush.msra.mxu0 %v114
    %760 = vmatpush.msra.mxu0 %v110
    %761 = vmatpush.msra.mxu0 %v106
    %762 = vmatpush.msra.mxu0 %v102
    %763 = vmatpush.msra.mxu0 %v98
    %764 = vmatpush.msra.mxu0 %v94
    %765 = vmatpush.msra.mxu0 %v90
    %766 = vmatpush.msra.mxu0 %v86
    %767 = vmatpush.msra.mxu0 %v82
    %768 = vmatpush.msra.mxu0 %v78
    %769 = vmatpush.msra.mxu0 %v74
    %770 = vmatpush.msra.mxu0 %v70
    %771 = vmatpush.msra.mxu0 %v66
    %772 = vmatpush.msra.mxu0 %v62
    %773 = vmatpush.msra.mxu0 %v58
    %774 = vmatmul.f32.gmra.mxu0 %v722
    %v775 = vpop.f32.mrf.mxu0
    %v776 = vadd.f32 0.0, %v775
    %777 = vdwg.mxu0
    %778 = vmatpush.msra.mxu0 %v119
    %779 = vmatpush.msra.mxu0 %v115
    %780 = vmatpush.msra.mxu0 %v111
    %781 = vmatpush.msra.mxu0 %v107
    %782 = vmatpush.msra.mxu0 %v103
    %783 = vmatpush.msra.mxu0 %v99
    %784 = vmatpush.msra.mxu0 %v95
    %785 = vmatpush.msra.mxu0 %v91
    %786 = vmatpush.msra.mxu0 %v87
    %787 = vmatpush.msra.mxu0 %v83
    %788 = vmatpush.msra.mxu0 %v79
    %789 = vmatpush.msra.mxu0 %v75
    %790 = vmatpush.msra.mxu0 %v71
    %791 = vmatpush.msra.mxu0 %v67
    %792 = vmatpush.msra.mxu0 %v63
    %793 = vmatpush.msra.mxu0 %v59
    %794 = vmatmul.f32.gmra.mxu0 %v722
    %v795 = vpop.f32.mrf.mxu0
    %v796 = vadd.f32 0.0, %v795
    %797 = vdwg.mxu0
    %798 = vmatpush.msra.mxu0 %v120
    %799 = vmatpush.msra.mxu0 %v116
    %800 = vmatpush.msra.mxu0 %v112
    %801 = vmatpush.msra.mxu0 %v108
    %802 = vmatpush.msra.mxu0 %v104
    %803 = vmatpush.msra.mxu0 %v100
    %804 = vmatpush.msra.mxu0 %v96
    %805 = vmatpush.msra.mxu0 %v92
    %806 = vmatpush.msra.mxu0 %v88
    %807 = vmatpush.msra.mxu0 %v84
    %808 = vmatpush.msra.mxu0 %v80
    %809 = vmatpush.msra.mxu0 %v76
    %810 = vmatpush.msra.mxu0 %v72
    %811 = vmatpush.msra.mxu0 %v68
    %812 = vmatpush.msra.mxu0 %v64
    %813 = vmatpush.msra.mxu0 %v60
    %814 = vmatmul.f32.gmra.mxu0 %v722
    %v815 = vpop.f32.mrf.mxu0
    %v816 = vadd.f32 0.0, %v815
    %817 = vdwg.mxu0
    %v818 = vadd.f32 %v734, %v756
    %v819 = vadd.f32 %v735, %v776
    %v820 = vadd.f32 %v736, %v796
    %v821 = vadd.f32 %v737, %v816
    %v822 = vmul.f32 %v818, 0.5
    %v823 = vmul.f32 %v819, 0.5
    %v824 = vmul.f32 %v820, 0.5
    %v825 = vtanh.pop %v822
    %v826 = vtanh.pop %v823
    %v827 = vtanh.pop %v824
    %v828 = vadd.f32 %v825, 1.0
    %v829 = vadd.f32 %v826, 1.0
    %v830 = vadd.f32 %v827, 1.0
    %v831 = vmul.f32 %v828, 0.5
    %v832 = vmul.f32 %v829, 0.5
    %v833 = vmul.f32 %v830, 0.5
    %v834 = vtanh.pop %v821
    %v835 = vmul.f32 %v832, %v720
    %v836 = vmul.f32 %v831, %v834
    %v837 = vadd.f32 %v835, %v836
    %v838 = vtanh.pop %v837
    %v839 = vmul.f32 %v833, %v838
    %s840 = scalar_lea.vmem %s0, 48
    %v841 = vld [vmem:[%s840] sm:$0xff]
    %843 = vset.pattern.permute.xlu0 0
    %844 = vperm.xlu0 %843, %v841
    %v845 = vpop.permute.xlu0 %844
    %v847 = vmul.f32 %v845, %v128
    %v848 = vmul.f32 %v845, %v129
    %v849 = vmul.f32 %v845, %v130
    %v850 = vmul.f32 %v845, %v131
    %v851 = vadd.f32 %v141, %v847
    %v852 = vadd.f32 %v142, %v848
    %v853 = vadd.f32 %v143, %v849
    %v854 = vadd.f32 %v144, %v850
    %855 = vmatpush.msra.mxu0 %v117
    %856 = vmatpush.msra.mxu0 %v113
    %857 = vmatpush.msra.mxu0 %v109
    %858 = vmatpush.msra.mxu0 %v105
    %859 = vmatpush.msra.mxu0 %v101
    %860 = vmatpush.msra.mxu0 %v97
    %861 = vmatpush.msra.mxu0 %v93
    %862 = vmatpush.msra.mxu0 %v89
    %863 = vmatpush.msra.mxu0 %v85
    %864 = vmatpush.msra.mxu0 %v81
    %865 = vmatpush.msra.mxu0 %v77
    %866 = vmatpush.msra.mxu0 %v73
    %867 = vmatpush.msra.mxu0 %v69
    %868 = vmatpush.msra.mxu0 %v65
    %869 = vmatpush.msra.mxu0 %v61
    %870 = vmatpush.msra.mxu0 %v57
    %871 = vmatmul.f32.gmra.mxu0 %v839
    %v872 = vpop.f32.mrf.mxu0
    %v873 = vadd.f32 0.0, %v872
    %874 = vdwg.mxu0
    %875 = vmatpush.msra.mxu0 %v118
    %876 = vmatpush.msra.mxu0 %v114
    %877 = vmatpush.msra.mxu0 %v110
    %878 = vmatpush.msra.mxu0 %v106
    %879 = vmatpush.msra.mxu0 %v102
    %880 = vmatpush.msra.mxu0 %v98
    %881 = vmatpush.msra.mxu0 %v94
    %882 = vmatpush.msra.mxu0 %v90
    %883 = vmatpush.msra.mxu0 %v86
    %884 = vmatpush.msra.mxu0 %v82
    %885 = vmatpush.msra.mxu0 %v78
    %886 = vmatpush.msra.mxu0 %v74
    %887 = vmatpush.msra.mxu0 %v70
    %888 = vmatpush.msra.mxu0 %v66
    %889 = vmatpush.msra.mxu0 %v62
    %890 = vmatpush.msra.mxu0 %v58
    %891 = vmatmul.f32.gmra.mxu0 %v839
    %v892 = vpop.f32.mrf.mxu0
    %v893 = vadd.f32 0.0, %v892
    %894 = vdwg.mxu0
    %895 = vmatpush.msra.mxu0 %v119
    %896 = vmatpush.msra.mxu0 %v115
    %897 = vmatpush.msra.mxu0 %v111
    %898 = vmatpush.msra.mxu0 %v107
    %899 = vmatpush.msra.mxu0 %v103
    %900 = vmatpush.msra.mxu0 %v99
    %901 = vmatpush.msra.mxu0 %v95
    %902 = vmatpush.msra.mxu0 %v91
    %903 = vmatpush.msra.mxu0 %v87
    %904 = vmatpush.msra.mxu0 %v83
    %905 = vmatpush.msra.mxu0 %v79
    %906 = vmatpush.msra.mxu0 %v75
    %907 = vmatpush.msra.mxu0 %v71
    %908 = vmatpush.msra.mxu0 %v67
    %909 = vmatpush.msra.mxu0 %v63
    %910 = vmatpush.msra.mxu0 %v59
    %911 = vmatmul.f32.gmra.mxu0 %v839
    %v912 = vpop.f32.mrf.mxu0
    %v913 = vadd.f32 0.0, %v912
    %914 = vdwg.mxu0
    %915 = vmatpush.msra.mxu0 %v120
    %916 = vmatpush.msra.mxu0 %v116
    %917 = vmatpush.msra.mxu0 %v112
    %918 = vmatpush.msra.mxu0 %v108
    %919 = vmatpush.msra.mxu0 %v104
    %920 = vmatpush.msra.mxu0 %v100
    %921 = vmatpush.msra.mxu0 %v96
    %922 = vmatpush.msra.mxu0 %v92
    %923 = vmatpush.msra.mxu0 %v88
    %924 = vmatpush.msra.mxu0 %v84
    %925 = vmatpush.msra.mxu0 %v80
    %926 = vmatpush.msra.mxu0 %v76
    %927 = vmatpush.msra.mxu0 %v72
    %928 = vmatpush.msra.mxu0 %v68
    %929 = vmatpush.msra.mxu0 %v64
    %930 = vmatpush.msra.mxu0 %v60
    %931 = vmatmul.f32.gmra.mxu0 %v839
    %v932 = vpop.f32.mrf.mxu0
    %v933 = vadd.f32 0.0, %v932
    %934 = vdwg.mxu0
    %v935 = vadd.f32 %v851, %v873
    %v936 = vadd.f32 %v852, %v893
    %v937 = vadd.f32 %v853, %v913
    %v938 = vadd.f32 %v854, %v933
    %v939 = vmul.f32 %v935, 0.5
    %v940 = vmul.f32 %v936, 0.5
    %v941 = vmul.f32 %v937, 0.5
    %v942 = vtanh.pop %v939
    %v943 = vtanh.pop %v940
    %v944 = vtanh.pop %v941
    %v945 = vadd.f32 %v942, 1.0
    %v946 = vadd.f32 %v943, 1.0
    %v947 = vadd.f32 %v944, 1.0
    %v948 = vmul.f32 %v945, 0.5
    %v949 = vmul.f32 %v946, 0.5
    %v950 = vmul.f32 %v947, 0.5
    %v951 = vtanh.pop %v938
    %v952 = vmul.f32 %v949, %v837
    %v953 = vmul.f32 %v948, %v951
    %v954 = vadd.f32 %v952, %v953
    %v955 = vtanh.pop %v954
    %v956 = vmul.f32 %v950, %v955
    %s957 = scalar_lea.vmem %s0, 56
    %v958 = vld [vmem:[%s957] sm:$0xff]
    %960 = vset.pattern.permute.xlu0 0
    %961 = vperm.xlu0 %960, %v958
    %v962 = vpop.permute.xlu0 %961
    %v964 = vmul.f32 %v962, %v128
    %v965 = vmul.f32 %v962, %v129
    %v966 = vmul.f32 %v962, %v130
    %v967 = vmul.f32 %v962, %v131
    %v968 = vadd.f32 %v141, %v964
    %v969 = vadd.f32 %v142, %v965
    %v970 = vadd.f32 %v143, %v966
    %v971 = vadd.f32 %v144, %v967
    %972 = vmatpush.msra.mxu0 %v117
    %973 = vmatpush.msra.mxu0 %v113
    %974 = vmatpush.msra.mxu0 %v109
    %975 = vmatpush.msra.mxu0 %v105
    %976 = vmatpush.msra.mxu0 %v101
    %977 = vmatpush.msra.mxu0 %v97
    %978 = vmatpush.msra.mxu0 %v93
    %979 = vmatpush.msra.mxu0 %v89
    %980 = vmatpush.msra.mxu0 %v85
    %981 = vmatpush.msra.mxu0 %v81
    %982 = vmatpush.msra.mxu0 %v77
    %983 = vmatpush.msra.mxu0 %v73
    %984 = vmatpush.msra.mxu0 %v69
    %985 = vmatpush.msra.mxu0 %v65
    %986 = vmatpush.msra.mxu0 %v61
    %987 = vmatpush.msra.mxu0 %v57
    %988 = vmatmul.f32.gmra.mxu0 %v956
    %v989 = vpop.f32.mrf.mxu0
    %v990 = vadd.f32 0.0, %v989
    %991 = vdwg.mxu0
    %992 = vmatpush.msra.mxu0 %v118
    %993 = vmatpush.msra.mxu0 %v114
    %994 = vmatpush.msra.mxu0 %v110
    %995 = vmatpush.msra.mxu0 %v106
    %996 = vmatpush.msra.mxu0 %v102
    %997 = vmatpush.msra.mxu0 %v98
    %998 = vmatpush.msra.mxu0 %v94
    %999 = vmatpush.msra.mxu0 %v90
    %1000 = vmatpush.msra.mxu0 %v86
    %1001 = vmatpush.msra.mxu0 %v82
    %1002 = vmatpush.msra.mxu0 %v78
    %1003 = vmatpush.msra.mxu0 %v74
    %1004 = vmatpush.msra.mxu0 %v70
    %1005 = vmatpush.msra.mxu0 %v66
    %1006 = vmatpush.msra.mxu0 %v62
    %1007 = vmatpush.msra.mxu0 %v58
    %1008 = vmatmul.f32.gmra.mxu0 %v956
    %v1009 = vpop.f32.mrf.mxu0
    %v1010 = vadd.f32 0.0, %v1009
    %1011 = vdwg.mxu0
    %1012 = vmatpush.msra.mxu0 %v119
    %1013 = vmatpush.msra.mxu0 %v115
    %1014 = vmatpush.msra.mxu0 %v111
    %1015 = vmatpush.msra.mxu0 %v107
    %1016 = vmatpush.msra.mxu0 %v103
    %1017 = vmatpush.msra.mxu0 %v99
    %1018 = vmatpush.msra.mxu0 %v95
    %1019 = vmatpush.msra.mxu0 %v91
    %1020 = vmatpush.msra.mxu0 %v87
    %1021 = vmatpush.msra.mxu0 %v83
    %1022 = vmatpush.msra.mxu0 %v79
    %1023 = vmatpush.msra.mxu0 %v75
    %1024 = vmatpush.msra.mxu0 %v71
    %1025 = vmatpush.msra.mxu0 %v67
    %1026 = vmatpush.msra.mxu0 %v63
    %1027 = vmatpush.msra.mxu0 %v59
    %1028 = vmatmul.f32.gmra.mxu0 %v956
    %v1029 = vpop.f32.mrf.mxu0
    %v1030 = vadd.f32 0.0, %v1029
    %1031 = vdwg.mxu0
    %1032 = vmatpush.msra.mxu0 %v120
    %1033 = vmatpush.msra.mxu0 %v116
    %1034 = vmatpush.msra.mxu0 %v112
    %1035 = vmatpush.msra.mxu0 %v108
    %1036 = vmatpush.msra.mxu0 %v104
    %1037 = vmatpush.msra.mxu0 %v100
    %1038 = vmatpush.msra.mxu0 %v96
    %1039 = vmatpush.msra.mxu0 %v92
    %1040 = vmatpush.msra.mxu0 %v88
    %1041 = vmatpush.msra.mxu0 %v84
    %1042 = vmatpush.msra.mxu0 %v80
    %1043 = vmatpush.msra.mxu0 %v76
    %1044 = vmatpush.msra.mxu0 %v72
    %1045 = vmatpush.msra.mxu0 %v68
    %1046 = vmatpush.msra.mxu0 %v64
    %1047 = vmatpush.msra.mxu0 %v60
    %1048 = vmatmul.f32.gmra.mxu0 %v956
    %v1049 = vpop.f32.mrf.mxu0
    %v1050 = vadd.f32 0.0, %v1049
    %1051 = vdwg.mxu0
    %v1052 = vadd.f32 %v968, %v990
    %v1053 = vadd.f32 %v969, %v1010
    %v1054 = vadd.f32 %v970, %v1030
    %v1055 = vadd.f32 %v971, %v1050
    %v1056 = vmul.f32 %v1052, 0.5
    %v1057 = vmul.f32 %v1053, 0.5
    %v1058 = vmul.f32 %v1054, 0.5
    %v1059 = vtanh.pop %v1056
    %v1060 = vtanh.pop %v1057
    %v1061 = vtanh.pop %v1058
    %v1062 = vadd.f32 %v1059, 1.0
    %v1063 = vadd.f32 %v1060, 1.0
    %v1064 = vadd.f32 %v1061, 1.0
    %v1065 = vmul.f32 %v1062, 0.5
    %v1066 = vmul.f32 %v1063, 0.5
    %v1067 = vmul.f32 %v1064, 0.5
    %v1068 = vtanh.pop %v1055
    %v1069 = vmul.f32 %v1066, %v954
    %v1070 = vmul.f32 %v1065, %v1068
    %v1071 = vadd.f32 %v1069, %v1070
    %v1072 = vtanh.pop %v1071
    %v1073 = vmul.f32 %v1067, %v1072
    %v1074 = vld [vmem:[#allocation4] sm:$0xff]
    %v1075 = vld [vmem:[#allocation4 + $0x8] sm:$0xff]
    %v1076 = vld [vmem:[#allocation4 + $0x10] sm:$0xff]
    %v1077 = vld [vmem:[#allocation4 + $0x18] sm:$0xff]
    %v1078 = vld [vmem:[#allocation4 + $0x20] sm:$0xff]
    %v1079 = vld [vmem:[#allocation4 + $0x28] sm:$0xff]
    %v1080 = vld [vmem:[#allocation4 + $0x30] sm:$0xff]
    %v1081 = vld [vmem:[#allocation4 + $0x38] sm:$0xff]
    %v1082 = vld [vmem:[#allocation4 + $0x40] sm:$0xff]
    %v1083 = vld [vmem:[#allocation4 + $0x48] sm:$0xff]
    %v1084 = vld [vmem:[#allocation4 + $0x50] sm:$0xff]
    %v1085 = vld [vmem:[#allocation4 + $0x58] sm:$0xff]
    %v1086 = vld [vmem:[#allocation4 + $0x60] sm:$0xff]
    %v1087 = vld [vmem:[#allocation4 + $0x68] sm:$0xff]
    %v1088 = vld [vmem:[#allocation4 + $0x70] sm:$0xff]
    %v1089 = vld [vmem:[#allocation4 + $0x78] sm:$0xff]
    %v1090 = vld [vmem:[%s5] sm:$0x1]
    %v1092 = vperm.slane %v1090, 0
    %1094 = vmatpush.msra.mxu0 %v1089
    %1095 = vmatpush.msra.mxu0 %v1088
    %1096 = vmatpush.msra.mxu0 %v1087
    %1097 = vmatpush.msra.mxu0 %v1086
    %1098 = vmatpush.msra.mxu0 %v1085
    %1099 = vmatpush.msra.mxu0 %v1084
    %1100 = vmatpush.msra.mxu0 %v1083
    %1101 = vmatpush.msra.mxu0 %v1082
    %1102 = vmatpush.msra.mxu0 %v1081
    %1103 = vmatpush.msra.mxu0 %v1080
    %1104 = vmatpush.msra.mxu0 %v1079
    %1105 = vmatpush.msra.mxu0 %v1078
    %1106 = vmatpush.msra.mxu0 %v1077
    %1107 = vmatpush.msra.mxu0 %v1076
    %1108 = vmatpush.msra.mxu0 %v1075
    %1109 = vmatpush.msra.mxu0 %v1074
    %1110 = vmatmul.f32.gmra.mxu0 %v1073
    %v1111 = vpop.f32.mrf.mxu0
    %v1112 = vadd.f32 %v1092, %v1111
    %1113 = vdwg.mxu0
    %1114 = vst [vmem:[%s6] sm:$0xff] %v1112
    // Predicated region
    $region34: #{lstm_model_forward.1} parent=1 // pred_check
      _
    $region35: #{lstm_model_forward.1} parent=1 // pred_check_branch
      %1116 = sbr.rel (0) target = $region37
    $region36: #{lstm_model_forward.1} parent=1 // pred_region
      _
    $region37: #{lstm_model_forward.1} parent=1 // pred_fallthru
      _
    // Predicated region
    $region38: #{lstm_model_forward.1} parent=1 // pred_check
      _
    $region39: #{lstm_model_forward.1} parent=1 // pred_check_branch
      %1118 = sbr.rel (0) target = $region41
    $region40: #{lstm_model_forward.1} parent=1 // pred_region
      _
    $region41: #{lstm_model_forward.1} parent=1 // pred_fallthru
      _
    %1119 = vsyncpa [#allocation3], 1
    %1120 = vsyncpa [#allocation5], 1

</llo_original>
